<compile_context>
chip_gen: v7x
topology: tpu7x:2x2x1
jax: 0.10.0
libtpu: 0.0.40
codegen_flags: <defaults>
</compile_context>

<pallas_src>
import functools
import jax
import jax.numpy as jnp
from jax import lax
from jax.experimental import pallas as pl
from jax.experimental.pallas import tpu as pltpu


def bilstm_kernel(x_ref, wih_ref, bih_ref, whh_ref, wl_ref, bl_ref,
                  out_ref, xp_ref, *, T, B, E, H):
    # ---------------- one-time precompute (no sequential dependency) --------
    # xproj = x @ [W_ih_f.T | W_ih_b.T] + [b_f | b_b]     -> (T*B, 8H)
    x_flat = x_ref[...].reshape(T * B, E)
    proj = jnp.dot(x_flat, wih_ref[...],
                   preferred_element_type=jnp.float32) + bih_ref[...]
    # Stacked per-step slabs in VMEM scratch: rows [:B] = forward x[t]
    # projection, rows [B:] = backward x[T-1-t] projection (time reversal
    # baked in so the recurrence reads one (2B, 4H) slab per step).
    for t in range(T):                       # T is static -> trace-time unroll
        xp_ref[t, :B, :] = proj[t * B:(t + 1) * B, :4 * H]
        tb = T - 1 - t
        xp_ref[t, B:, :] = proj[tb * B:(tb + 1) * B, 4 * H:]

    # ---------------- hoisted loop invariants -------------------------------
    whh = whh_ref[...]                                               # (H, 8H)
    row_ids = lax.broadcasted_iota(jnp.int32, (2 * B, 4 * H), 0)
    is_fwd_row = row_ids < B                 # fwd rows use cols [:4H]
    lane_ids = lax.broadcasted_iota(jnp.int32, (2 * B, 4 * H), 1)
    is_g_lane = (lane_ids >= 2 * H) & (lane_ids < 3 * H)   # tanh gate block

    def gate_update(gates, c):
        # Two full-tile EUP passes + one lane select (gate order: i, f, g, o).
        act = jnp.where(is_g_lane, jnp.tanh(gates), jax.nn.sigmoid(gates))
        i = act[:, 0 * H:1 * H]
        f = act[:, 1 * H:2 * H]
        g = act[:, 2 * H:3 * H]
        o = act[:, 3 * H:4 * H]
        c_new = f * c + i * g
        h_new = o * jnp.tanh(c_new)
        return h_new, c_new

    # Step 0: h == 0, so the recurrent matmul vanishes and gates == xproj[0].
    c0 = jnp.zeros((2 * B, H), jnp.float32)
    h, c = gate_update(xp_ref[0], c0)
    # Backward direction's contribution to lstm_out[-1] (sequence position
    # T-1) is its hidden state after this first step.
    h_b_last = h[B:]

    def body(t, carry):
        h, c = carry
        # Single per-step MXU op, contraction depth H only.
        g8 = jnp.dot(h, whh, preferred_element_type=jnp.float32)    # (2B, 8H)
        # fwd rows take cols [:4H], bwd rows take cols [4H:]; with H=32 both
        # slices are 128-lane aligned.  Bias is already folded into xp.
        gates = jnp.where(is_fwd_row, g8[:, :4 * H], g8[:, 4 * H:]) + xp_ref[t]
        return gate_update(gates, c)

    unroll = min(max(T - 1, 1), 8)           # full unroll for small T, capped
    h, c = lax.fori_loop(1, T, body, (h, c), unroll=unroll)

    # ---------------- hidden2label + log_softmax (fused) --------------------
    feat = jnp.concatenate([h[:B], h_b_last], axis=-1)              # (B, 2H)
    y = (jnp.dot(feat, wl_ref[...], preferred_element_type=jnp.float32)
         + bl_ref[...])                                             # (B, L)
    m = jnp.max(y, axis=-1, keepdims=True)
    lse = jnp.log(jnp.sum(jnp.exp(y - m), axis=-1, keepdims=True)) + m
    out_ref[...] = (y - lse).astype(out_ref.dtype)


def prepare_params(params):
    """One-time fusion of PyTorch-layout weights into the kernel layout.

    Kept off the per-call path (review: the handful of transpose/concat XLA
    ops can exceed the kernel's wall time at these sizes).
    """
    H = params["w_hh_f"].shape[1]
    L = params["w_label"].shape[0]
    w_ih = jnp.concatenate([params["w_ih_f"].T, params["w_ih_b"].T], axis=1)  # (E, 8H)
    w_hh = jnp.concatenate([params["w_hh_f"].T, params["w_hh_b"].T], axis=1)  # (H, 8H)
    b_ih = jnp.concatenate([params["b_ih_f"] + params["b_hh_f"],
                            params["b_ih_b"] + params["b_hh_b"]]).reshape(1, 8 * H)
    return {
        "w_ih": w_ih,
        "w_hh": w_hh,
        "b_ih": b_ih,
        "w_label": params["w_label"].T,               # (2H, L)
        "b_label": params["b_label"].reshape(1, L),   # (1, L)
    }


def bilstm_sentiment_forward(x, fused):
    """x: (T, B, E) float32; fused: prepare_params output. Returns (B, L)."""
    T, B, E = x.shape
    H = fused["w_hh"].shape[0]
    L = fused["w_label"].shape[1]

    kernel = functools.partial(bilstm_kernel, T=T, B=B, E=E, H=H)
    vmem = pl.BlockSpec(memory_space=pltpu.MemorySpace.VMEM)

    # TODO(synk): for production T/B/E/H — bf16 MXU operands (f32 accumulation,
    # f32 gate math; keep f32 everywhere on v5e), 128-padded gate blocks, a
    # batch-tile grid axis marked "parallel" to use v7x's 2nd TensorCore, and
    # streamed x (pl.ANY + make_async_copy) if the resident footprint nears
    # v7x's 64 MiB VMEM.  At these sizes the fully-resident design is optimal.
    return pl.pallas_call(
        kernel,
        out_shape=jax.ShapeDtypeStruct((B, L), jnp.float32),
        in_specs=[vmem] * 6,
        out_specs=vmem,
        scratch_shapes=[pltpu.VMEM((T, 2 * B, 4 * H), jnp.float32)],
        compiler_params=pltpu.CompilerParams(
            vmem_limit_bytes=32 * 1024 * 1024),
    )(x, fused["w_ih"], fused["b_ih"], fused["w_hh"],
      fused["w_label"], fused["b_label"])


def init_params(key, embedding_dim, hidden_dim, label_size):
    """Deterministic PyTorch-style init: U(-1/sqrt(H), 1/sqrt(H))."""
    H, E, L = hidden_dim, embedding_dim, label_size
    k = 1.0 / jnp.sqrt(H)
    keys = jax.random.split(key, 10)
    u = lambda kk, shape: jax.random.uniform(kk, shape, jnp.float32, -k, k)
    return {
        "w_ih_f": u(keys[0], (4 * H, E)),
        "w_hh_f": u(keys[1], (4 * H, H)),
        "b_ih_f": u(keys[2], (4 * H,)),
        "b_hh_f": u(keys[3], (4 * H,)),
        "w_ih_b": u(keys[4], (4 * H, E)),
        "w_hh_b": u(keys[5], (4 * H, H)),
        "b_ih_b": u(keys[6], (4 * H,)),
        "b_hh_b": u(keys[7], (4 * H,)),
        "w_label": u(keys[8], (L, 2 * H)),
        "b_label": u(keys[9], (L,)),
    }


def _reference_forward(x, params):
    """Pure-JAX reference (mirrors PyTorch semantics) for a sanity check."""
    T, B, E = x.shape
    H = params["w_hh_f"].shape[1]

    def scan_dir(xs, w_ih, w_hh, b_ih, b_hh):
        def step(carry, x_t):
            h, c = carry
            g = x_t @ w_ih.T + h @ w_hh.T + b_ih + b_hh
            i = jax.nn.sigmoid(g[:, :H])
            f = jax.nn.sigmoid(g[:, H:2 * H])
            gg = jnp.tanh(g[:, 2 * H:3 * H])
            o = jax.nn.sigmoid(g[:, 3 * H:])
            c = f * c + i * gg
            h = o * jnp.tanh(c)
            return (h, c), h
        init = (jnp.zeros((B, H)), jnp.zeros((B, H)))
        _, hs = jax.lax.scan(step, init, xs)
        return hs

    hs_f = scan_dir(x, params["w_ih_f"], params["w_hh_f"],
                    params["b_ih_f"], params["b_hh_f"])
    hs_b = scan_dir(x[::-1], params["w_ih_b"], params["w_hh_b"],
                    params["b_ih_b"], params["b_hh_b"])[::-1]
    last = jnp.concatenate([hs_f[-1], hs_b[-1]], axis=-1)
    y = last @ params["w_label"].T + params["b_label"]
    return jax.nn.log_softmax(y, axis=-1)


if __name__ == "__main__":
    T, B, E, H, L = 8, 8, 32, 32, 2   # seq, batch, embedding, hidden, labels

    key = jax.random.PRNGKey(0)
    k_x, k_p = jax.random.split(key)
    x = jax.random.normal(k_x, (T, B, E), dtype=jnp.float32)
    params = init_params(k_p, E, H, L)

    fused = prepare_params(params)            # one-time weight fusion
    fwd = jax.jit(bilstm_sentiment_forward)
    out = jax.block_until_ready(fwd(x, fused))

    ref = _reference_forward(x, params)
    assert out.shape == (B, L)
    assert jnp.allclose(out, ref, atol=2e-5, rtol=2e-5), "mismatch vs reference"
    print("KERNEL_OK")
</pallas_src>

<mosaic_0001>
module attributes {stable_mosaic.version = 11 : i64} {
  func.func @bilstm_kernel(%arg0: memref<8x8x32xf32, #tpu.memory_space<vmem>>, %arg1: memref<32x256xf32, #tpu.memory_space<vmem>>, %arg2: memref<1x256xf32, #tpu.memory_space<vmem>>, %arg3: memref<32x256xf32, #tpu.memory_space<vmem>>, %arg4: memref<64x2xf32, #tpu.memory_space<vmem>>, %arg5: memref<1x2xf32, #tpu.memory_space<vmem>>, %arg6: memref<8x2xf32, #tpu.memory_space<vmem>>, %arg7: memref<8x16x128xf32, #tpu.memory_space<vmem>>) attributes {dimension_semantics = [], scalar_prefetch = 0 : i64, scratch_operands = 1 : i64, tpu.core_type = #tpu.core_type<tc>} {
    %c0 = arith.constant 0 : index
    %c0_0 = arith.constant 0 : index
    %c0_1 = arith.constant 0 : index
    %0 = vector.load %arg0[%c0, %c0_0, %c0_1] : memref<8x8x32xf32, #tpu.memory_space<vmem>>, vector<8x8x32xf32>
    %1 = vector.shape_cast %0 : vector<8x8x32xf32> to vector<64x32xf32>
    %c0_2 = arith.constant 0 : index
    %c0_3 = arith.constant 0 : index
    %2 = vector.load %arg1[%c0_2, %c0_3] : memref<32x256xf32, #tpu.memory_space<vmem>>, vector<32x256xf32>
    %cst = arith.constant dense<0.000000e+00> : vector<64x256xf32>
    %3 = tpu.matmul %1, %2, %cst {dimension_numbers = #tpu.dot_dimension_numbers<[1], [0], [0], [1], [0, 0, 1, 1], [], []>} : vector<64x32xf32>, vector<32x256xf32>, vector<64x256xf32> -> vector<64x256xf32>
    %c0_4 = arith.constant 0 : index
    %c0_5 = arith.constant 0 : index
    %4 = vector.load %arg2[%c0_4, %c0_5] : memref<1x256xf32, #tpu.memory_space<vmem>>, vector<1x256xf32>
    %5 = vector.broadcast %4 : vector<1x256xf32> to vector<64x256xf32>
    %6 = arith.addf %3, %5 : vector<64x256xf32>
    %7 = vector.extract_strided_slice %6 {offsets = [0, 0], sizes = [8, 128], strides = [1, 1]} : vector<64x256xf32> to vector<8x128xf32>
    %c0_6 = arith.constant 0 : index
    %c0_7 = arith.constant 0 : index
    %c0_8 = arith.constant 0 : index
    %8 = vector.load %arg7[%c0_6, %c0_7, %c0_8] : memref<8x16x128xf32, #tpu.memory_space<vmem>>, vector<1x8x128xf32>
    %9 = vector.shape_cast %8 : vector<1x8x128xf32> to vector<8x128xf32>
    %10 = vector.shape_cast %7 : vector<8x128xf32> to vector<1x8x128xf32>
    tpu.vector_store %arg7[%c0_6, %c0_7, %c0_8], %10 {strides = array<i32>} : memref<8x16x128xf32, #tpu.memory_space<vmem>>, vector<1x8x128xf32>,
    %11 = vector.extract_strided_slice %6 {offsets = [56, 128], sizes = [8, 128], strides = [1, 1]} : vector<64x256xf32> to vector<8x128xf32>
    %c0_9 = arith.constant 0 : index
    %c8 = arith.constant 8 : index
    %c0_10 = arith.constant 0 : index
    %12 = vector.load %arg7[%c0_9, %c8, %c0_10] : memref<8x16x128xf32, #tpu.memory_space<vmem>>, vector<1x8x128xf32>
    %13 = vector.shape_cast %12 : vector<1x8x128xf32> to vector<8x128xf32>
    %14 = vector.shape_cast %11 : vector<8x128xf32> to vector<1x8x128xf32>
    tpu.vector_store %arg7[%c0_9, %c8, %c0_10], %14 {strides = array<i32>} : memref<8x16x128xf32, #tpu.memory_space<vmem>>, vector<1x8x128xf32>,
    %15 = vector.extract_strided_slice %6 {offsets = [8, 0], sizes = [8, 128], strides = [1, 1]} : vector<64x256xf32> to vector<8x128xf32>
    %c1 = arith.constant 1 : index
    %c0_11 = arith.constant 0 : index
    %c0_12 = arith.constant 0 : index
    %16 = vector.load %arg7[%c1, %c0_11, %c0_12] : memref<8x16x128xf32, #tpu.memory_space<vmem>>, vector<1x8x128xf32>
    %17 = vector.shape_cast %16 : vector<1x8x128xf32> to vector<8x128xf32>
    %18 = vector.shape_cast %15 : vector<8x128xf32> to vector<1x8x128xf32>
    tpu.vector_store %arg7[%c1, %c0_11, %c0_12], %18 {strides = array<i32>} : memref<8x16x128xf32, #tpu.memory_space<vmem>>, vector<1x8x128xf32>,
    %19 = vector.extract_strided_slice %6 {offsets = [48, 128], sizes = [8, 128], strides = [1, 1]} : vector<64x256xf32> to vector<8x128xf32>
    %c1_13 = arith.constant 1 : index
    %c8_14 = arith.constant 8 : index
    %c0_15 = arith.constant 0 : index
    %20 = vector.load %arg7[%c1_13, %c8_14, %c0_15] : memref<8x16x128xf32, #tpu.memory_space<vmem>>, vector<1x8x128xf32>
    %21 = vector.shape_cast %20 : vector<1x8x128xf32> to vector<8x128xf32>
    %22 = vector.shape_cast %19 : vector<8x128xf32> to vector<1x8x128xf32>
    tpu.vector_store %arg7[%c1_13, %c8_14, %c0_15], %22 {strides = array<i32>} : memref<8x16x128xf32, #tpu.memory_space<vmem>>, vector<1x8x128xf32>,
    %23 = vector.extract_strided_slice %6 {offsets = [16, 0], sizes = [8, 128], strides = [1, 1]} : vector<64x256xf32> to vector<8x128xf32>
    %c2 = arith.constant 2 : index
    %c0_16 = arith.constant 0 : index
    %c0_17 = arith.constant 0 : index
    %24 = vector.load %arg7[%c2, %c0_16, %c0_17] : memref<8x16x128xf32, #tpu.memory_space<vmem>>, vector<1x8x128xf32>
    %25 = vector.shape_cast %24 : vector<1x8x128xf32> to vector<8x128xf32>
    %26 = vector.shape_cast %23 : vector<8x128xf32> to vector<1x8x128xf32>
    tpu.vector_store %arg7[%c2, %c0_16, %c0_17], %26 {strides = array<i32>} : memref<8x16x128xf32, #tpu.memory_space<vmem>>, vector<1x8x128xf32>,
    %27 = vector.extract_strided_slice %6 {offsets = [40, 128], sizes = [8, 128], strides = [1, 1]} : vector<64x256xf32> to vector<8x128xf32>
    %c2_18 = arith.constant 2 : index
    %c8_19 = arith.constant 8 : index
    %c0_20 = arith.constant 0 : index
    %28 = vector.load %arg7[%c2_18, %c8_19, %c0_20] : memref<8x16x128xf32, #tpu.memory_space<vmem>>, vector<1x8x128xf32>
    %29 = vector.shape_cast %28 : vector<1x8x128xf32> to vector<8x128xf32>
    %30 = vector.shape_cast %27 : vector<8x128xf32> to vector<1x8x128xf32>
    tpu.vector_store %arg7[%c2_18, %c8_19, %c0_20], %30 {strides = array<i32>} : memref<8x16x128xf32, #tpu.memory_space<vmem>>, vector<1x8x128xf32>,
    %31 = vector.extract_strided_slice %6 {offsets = [24, 0], sizes = [8, 128], strides = [1, 1]} : vector<64x256xf32> to vector<8x128xf32>
    %c3 = arith.constant 3 : index
    %c0_21 = arith.constant 0 : index
    %c0_22 = arith.constant 0 : index
    %32 = vector.load %arg7[%c3, %c0_21, %c0_22] : memref<8x16x128xf32, #tpu.memory_space<vmem>>, vector<1x8x128xf32>
    %33 = vector.shape_cast %32 : vector<1x8x128xf32> to vector<8x128xf32>
    %34 = vector.shape_cast %31 : vector<8x128xf32> to vector<1x8x128xf32>
    tpu.vector_store %arg7[%c3, %c0_21, %c0_22], %34 {strides = array<i32>} : memref<8x16x128xf32, #tpu.memory_space<vmem>>, vector<1x8x128xf32>,
    %35 = vector.extract_strided_slice %6 {offsets = [32, 128], sizes = [8, 128], strides = [1, 1]} : vector<64x256xf32> to vector<8x128xf32>
    %c3_23 = arith.constant 3 : index
    %c8_24 = arith.constant 8 : index
    %c0_25 = arith.constant 0 : index
    %36 = vector.load %arg7[%c3_23, %c8_24, %c0_25] : memref<8x16x128xf32, #tpu.memory_space<vmem>>, vector<1x8x128xf32>
    %37 = vector.shape_cast %36 : vector<1x8x128xf32> to vector<8x128xf32>
    %38 = vector.shape_cast %35 : vector<8x128xf32> to vector<1x8x128xf32>
    tpu.vector_store %arg7[%c3_23, %c8_24, %c0_25], %38 {strides = array<i32>} : memref<8x16x128xf32, #tpu.memory_space<vmem>>, vector<1x8x128xf32>,
    %39 = vector.extract_strided_slice %6 {offsets = [32, 0], sizes = [8, 128], strides = [1, 1]} : vector<64x256xf32> to vector<8x128xf32>
    %c4 = arith.constant 4 : index
    %c0_26 = arith.constant 0 : index
    %c0_27 = arith.constant 0 : index
    %40 = vector.load %arg7[%c4, %c0_26, %c0_27] : memref<8x16x128xf32, #tpu.memory_space<vmem>>, vector<1x8x128xf32>
    %41 = vector.shape_cast %40 : vector<1x8x128xf32> to vector<8x128xf32>
    %42 = vector.shape_cast %39 : vector<8x128xf32> to vector<1x8x128xf32>
    tpu.vector_store %arg7[%c4, %c0_26, %c0_27], %42 {strides = array<i32>} : memref<8x16x128xf32, #tpu.memory_space<vmem>>, vector<1x8x128xf32>,
    %43 = vector.extract_strided_slice %6 {offsets = [24, 128], sizes = [8, 128], strides = [1, 1]} : vector<64x256xf32> to vector<8x128xf32>
    %c4_28 = arith.constant 4 : index
    %c8_29 = arith.constant 8 : index
    %c0_30 = arith.constant 0 : index
    %44 = vector.load %arg7[%c4_28, %c8_29, %c0_30] : memref<8x16x128xf32, #tpu.memory_space<vmem>>, vector<1x8x128xf32>
    %45 = vector.shape_cast %44 : vector<1x8x128xf32> to vector<8x128xf32>
    %46 = vector.shape_cast %43 : vector<8x128xf32> to vector<1x8x128xf32>
    tpu.vector_store %arg7[%c4_28, %c8_29, %c0_30], %46 {strides = array<i32>} : memref<8x16x128xf32, #tpu.memory_space<vmem>>, vector<1x8x128xf32>,
    %47 = vector.extract_strided_slice %6 {offsets = [40, 0], sizes = [8, 128], strides = [1, 1]} : vector<64x256xf32> to vector<8x128xf32>
    %c5 = arith.constant 5 : index
    %c0_31 = arith.constant 0 : index
    %c0_32 = arith.constant 0 : index
    %48 = vector.load %arg7[%c5, %c0_31, %c0_32] : memref<8x16x128xf32, #tpu.memory_space<vmem>>, vector<1x8x128xf32>
    %49 = vector.shape_cast %48 : vector<1x8x128xf32> to vector<8x128xf32>
    %50 = vector.shape_cast %47 : vector<8x128xf32> to vector<1x8x128xf32>
    tpu.vector_store %arg7[%c5, %c0_31, %c0_32], %50 {strides = array<i32>} : memref<8x16x128xf32, #tpu.memory_space<vmem>>, vector<1x8x128xf32>,
    %51 = vector.extract_strided_slice %6 {offsets = [16, 128], sizes = [8, 128], strides = [1, 1]} : vector<64x256xf32> to vector<8x128xf32>
    %c5_33 = arith.constant 5 : index
    %c8_34 = arith.constant 8 : index
    %c0_35 = arith.constant 0 : index
    %52 = vector.load %arg7[%c5_33, %c8_34, %c0_35] : memref<8x16x128xf32, #tpu.memory_space<vmem>>, vector<1x8x128xf32>
    %53 = vector.shape_cast %52 : vector<1x8x128xf32> to vector<8x128xf32>
    %54 = vector.shape_cast %51 : vector<8x128xf32> to vector<1x8x128xf32>
    tpu.vector_store %arg7[%c5_33, %c8_34, %c0_35], %54 {strides = array<i32>} : memref<8x16x128xf32, #tpu.memory_space<vmem>>, vector<1x8x128xf32>,
    %55 = vector.extract_strided_slice %6 {offsets = [48, 0], sizes = [8, 128], strides = [1, 1]} : vector<64x256xf32> to vector<8x128xf32>
    %c6 = arith.constant 6 : index
    %c0_36 = arith.constant 0 : index
    %c0_37 = arith.constant 0 : index
    %56 = vector.load %arg7[%c6, %c0_36, %c0_37] : memref<8x16x128xf32, #tpu.memory_space<vmem>>, vector<1x8x128xf32>
    %57 = vector.shape_cast %56 : vector<1x8x128xf32> to vector<8x128xf32>
    %58 = vector.shape_cast %55 : vector<8x128xf32> to vector<1x8x128xf32>
    tpu.vector_store %arg7[%c6, %c0_36, %c0_37], %58 {strides = array<i32>} : memref<8x16x128xf32, #tpu.memory_space<vmem>>, vector<1x8x128xf32>,
    %59 = vector.extract_strided_slice %6 {offsets = [8, 128], sizes = [8, 128], strides = [1, 1]} : vector<64x256xf32> to vector<8x128xf32>
    %c6_38 = arith.constant 6 : index
    %c8_39 = arith.constant 8 : index
    %c0_40 = arith.constant 0 : index
    %60 = vector.load %arg7[%c6_38, %c8_39, %c0_40] : memref<8x16x128xf32, #tpu.memory_space<vmem>>, vector<1x8x128xf32>
    %61 = vector.shape_cast %60 : vector<1x8x128xf32> to vector<8x128xf32>
    %62 = vector.shape_cast %59 : vector<8x128xf32> to vector<1x8x128xf32>
    tpu.vector_store %arg7[%c6_38, %c8_39, %c0_40], %62 {strides = array<i32>} : memref<8x16x128xf32, #tpu.memory_space<vmem>>, vector<1x8x128xf32>,
    %63 = vector.extract_strided_slice %6 {offsets = [56, 0], sizes = [8, 128], strides = [1, 1]} : vector<64x256xf32> to vector<8x128xf32>
    %c7 = arith.constant 7 : index
    %c0_41 = arith.constant 0 : index
    %c0_42 = arith.constant 0 : index
    %64 = vector.load %arg7[%c7, %c0_41, %c0_42] : memref<8x16x128xf32, #tpu.memory_space<vmem>>, vector<1x8x128xf32>
    %65 = vector.shape_cast %64 : vector<1x8x128xf32> to vector<8x128xf32>
    %66 = vector.shape_cast %63 : vector<8x128xf32> to vector<1x8x128xf32>
    tpu.vector_store %arg7[%c7, %c0_41, %c0_42], %66 {strides = array<i32>} : memref<8x16x128xf32, #tpu.memory_space<vmem>>, vector<1x8x128xf32>,
    %67 = vector.extract_strided_slice %6 {offsets = [0, 128], sizes = [8, 128], strides = [1, 1]} : vector<64x256xf32> to vector<8x128xf32>
    %c7_43 = arith.constant 7 : index
    %c8_44 = arith.constant 8 : index
    %c0_45 = arith.constant 0 : index
    %68 = vector.load %arg7[%c7_43, %c8_44, %c0_45] : memref<8x16x128xf32, #tpu.memory_space<vmem>>, vector<1x8x128xf32>
    %69 = vector.shape_cast %68 : vector<1x8x128xf32> to vector<8x128xf32>
    %70 = vector.shape_cast %67 : vector<8x128xf32> to vector<1x8x128xf32>
    tpu.vector_store %arg7[%c7_43, %c8_44, %c0_45], %70 {strides = array<i32>} : memref<8x16x128xf32, #tpu.memory_space<vmem>>, vector<1x8x128xf32>,
    %c0_46 = arith.constant 0 : index
    %c0_47 = arith.constant 0 : index
    %71 = vector.load %arg3[%c0_46, %c0_47] : memref<32x256xf32, #tpu.memory_space<vmem>>, vector<32x256xf32>
    %72 = tpu.iota {dimensions = array<i32: 0>} : vector<16x128xi32>
    %c8_i32 = arith.constant 8 : i32
    %73 = vector.broadcast %c8_i32 : i32 to vector<16x128xi32>
    %74 = arith.cmpi slt, %72, %73 : vector<16x128xi32>
    %75 = tpu.iota {dimensions = array<i32: 1>} : vector<16x128xi32>
    %c64_i32 = arith.constant 64 : i32
    %76 = vector.broadcast %c64_i32 : i32 to vector<16x128xi32>
    %77 = arith.cmpi sge, %75, %76 : vector<16x128xi32>
    %c96_i32 = arith.constant 96 : i32
    %78 = vector.broadcast %c96_i32 : i32 to vector<16x128xi32>
    %79 = arith.cmpi slt, %75, %78 : vector<16x128xi32>
    %80 = arith.andi %77, %79 : vector<16x128xi1>
    %cst_48 = arith.constant 0.000000e+00 : f32
    %81 = vector.broadcast %cst_48 : f32 to vector<16x32xf32>
    %c0_49 = arith.constant 0 : index
    %c0_50 = arith.constant 0 : index
    %c0_51 = arith.constant 0 : index
    %82 = vector.load %arg7[%c0_49, %c0_50, %c0_51] : memref<8x16x128xf32, #tpu.memory_space<vmem>>, vector<1x16x128xf32>
    %83 = vector.shape_cast %82 : vector<1x16x128xf32> to vector<16x128xf32>
    %84 = math.tanh %83 : vector<16x128xf32>
    %85 = arith.negf %83 : vector<16x128xf32>
    %86 = math.exp %85 : vector<16x128xf32>
    %cst_52 = arith.constant 1.000000e+00 : f32
    %87 = vector.broadcast %cst_52 : f32 to vector<16x128xf32>
    %88 = arith.addf %87, %86 : vector<16x128xf32>
    %89 = arith.divf %87, %88 : vector<16x128xf32>
    %90 = arith.select %80, %84, %89 : vector<16x128xi1>, vector<16x128xf32>
    %91 = vector.extract_strided_slice %90 {offsets = [0, 0], sizes = [16, 32], strides = [1, 1]} : vector<16x128xf32> to vector<16x32xf32>
    %92 = vector.extract_strided_slice %90 {offsets = [0, 32], sizes = [16, 32], strides = [1, 1]} : vector<16x128xf32> to vector<16x32xf32>
    %93 = vector.extract_strided_slice %90 {offsets = [0, 64], sizes = [16, 32], strides = [1, 1]} : vector<16x128xf32> to vector<16x32xf32>
    %94 = vector.extract_strided_slice %90 {offsets = [0, 96], sizes = [16, 32], strides = [1, 1]} : vector<16x128xf32> to vector<16x32xf32>
    %95 = arith.mulf %92, %81 : vector<16x32xf32>
    %96 = arith.mulf %91, %93 : vector<16x32xf32>
    %97 = arith.addf %95, %96 : vector<16x32xf32>
    %98 = math.tanh %97 : vector<16x32xf32>
    %99 = arith.mulf %94, %98 : vector<16x32xf32>
    %100 = vector.extract_strided_slice %99 {offsets = [8, 0], sizes = [8, 32], strides = [1, 1]} : vector<16x32xf32> to vector<8x32xf32>
    %c1_i32 = arith.constant 1 : i32
    %cst_53 = arith.constant dense<0.000000e+00> : vector<16x256xf32>
    %101 = tpu.matmul %99, %71, %cst_53 {dimension_numbers = #tpu.dot_dimension_numbers<[1], [0], [0], [1], [0, 0, 1, 1], [], []>} : vector<16x32xf32>, vector<32x256xf32>, vector<16x256xf32> -> vector<16x256xf32>
    %102 = vector.extract_strided_slice %101 {offsets = [0, 0], sizes = [16, 128], strides = [1, 1]} : vector<16x256xf32> to vector<16x128xf32>
    %103 = vector.extract_strided_slice %101 {offsets = [0, 128], sizes = [16, 128], strides = [1, 1]} : vector<16x256xf32> to vector<16x128xf32>
    %104 = arith.select %74, %102, %103 : vector<16x128xi1>, vector<16x128xf32>
    %105 = arith.index_cast %c1_i32 : i32 to index
    %c0_54 = arith.constant 0 : index
    %c0_55 = arith.constant 0 : index
    %106 = vector.load %arg7[%105, %c0_54, %c0_55] : memref<8x16x128xf32, #tpu.memory_space<vmem>>, vector<1x16x128xf32>
    %107 = vector.shape_cast %106 : vector<1x16x128xf32> to vector<16x128xf32>
    %108 = arith.addf %104, %107 : vector<16x128xf32>
    %109 = math.tanh %108 : vector<16x128xf32>
    %110 = arith.negf %108 : vector<16x128xf32>
    %111 = math.exp %110 : vector<16x128xf32>
    %cst_56 = arith.constant 1.000000e+00 : f32
    %112 = vector.broadcast %cst_56 : f32 to vector<16x128xf32>
    %113 = arith.addf %112, %111 : vector<16x128xf32>
    %114 = arith.divf %112, %113 : vector<16x128xf32>
    %115 = arith.select %80, %109, %114 : vector<16x128xi1>, vector<16x128xf32>
    %116 = vector.extract_strided_slice %115 {offsets = [0, 0], sizes = [16, 32], strides = [1, 1]} : vector<16x128xf32> to vector<16x32xf32>
    %117 = vector.extract_strided_slice %115 {offsets = [0, 32], sizes = [16, 32], strides = [1, 1]} : vector<16x128xf32> to vector<16x32xf32>
    %118 = vector.extract_strided_slice %115 {offsets = [0, 64], sizes = [16, 32], strides = [1, 1]} : vector<16x128xf32> to vector<16x32xf32>
    %119 = vector.extract_strided_slice %115 {offsets = [0, 96], sizes = [16, 32], strides = [1, 1]} : vector<16x128xf32> to vector<16x32xf32>
    %120 = arith.mulf %117, %97 : vector<16x32xf32>
    %121 = arith.mulf %116, %118 : vector<16x32xf32>
    %122 = arith.addf %120, %121 : vector<16x32xf32>
    %123 = math.tanh %122 : vector<16x32xf32>
    %124 = arith.mulf %119, %123 : vector<16x32xf32>
    %c2_i32 = arith.constant 2 : i32
    %cst_57 = arith.constant dense<0.000000e+00> : vector<16x256xf32>
    %125 = tpu.matmul %124, %71, %cst_57 {dimension_numbers = #tpu.dot_dimension_numbers<[1], [0], [0], [1], [0, 0, 1, 1], [], []>} : vector<16x32xf32>, vector<32x256xf32>, vector<16x256xf32> -> vector<16x256xf32>
    %126 = vector.extract_strided_slice %125 {offsets = [0, 0], sizes = [16, 128], strides = [1, 1]} : vector<16x256xf32> to vector<16x128xf32>
    %127 = vector.extract_strided_slice %125 {offsets = [0, 128], sizes = [16, 128], strides = [1, 1]} : vector<16x256xf32> to vector<16x128xf32>
    %128 = arith.select %74, %126, %127 : vector<16x128xi1>, vector<16x128xf32>
    %129 = arith.index_cast %c2_i32 : i32 to index
    %c0_58 = arith.constant 0 : index
    %c0_59 = arith.constant 0 : index
    %130 = vector.load %arg7[%129, %c0_58, %c0_59] : memref<8x16x128xf32, #tpu.memory_space<vmem>>, vector<1x16x128xf32>
    %131 = vector.shape_cast %130 : vector<1x16x128xf32> to vector<16x128xf32>
    %132 = arith.addf %128, %131 : vector<16x128xf32>
    %133 = math.tanh %132 : vector<16x128xf32>
    %134 = arith.negf %132 : vector<16x128xf32>
    %135 = math.exp %134 : vector<16x128xf32>
    %cst_60 = arith.constant 1.000000e+00 : f32
    %136 = vector.broadcast %cst_60 : f32 to vector<16x128xf32>
    %137 = arith.addf %136, %135 : vector<16x128xf32>
    %138 = arith.divf %136, %137 : vector<16x128xf32>
    %139 = arith.select %80, %133, %138 : vector<16x128xi1>, vector<16x128xf32>
    %140 = vector.extract_strided_slice %139 {offsets = [0, 0], sizes = [16, 32], strides = [1, 1]} : vector<16x128xf32> to vector<16x32xf32>
    %141 = vector.extract_strided_slice %139 {offsets = [0, 32], sizes = [16, 32], strides = [1, 1]} : vector<16x128xf32> to vector<16x32xf32>
    %142 = vector.extract_strided_slice %139 {offsets = [0, 64], sizes = [16, 32], strides = [1, 1]} : vector<16x128xf32> to vector<16x32xf32>
    %143 = vector.extract_strided_slice %139 {offsets = [0, 96], sizes = [16, 32], strides = [1, 1]} : vector<16x128xf32> to vector<16x32xf32>
    %144 = arith.mulf %141, %122 : vector<16x32xf32>
    %145 = arith.mulf %140, %142 : vector<16x32xf32>
    %146 = arith.addf %144, %145 : vector<16x32xf32>
    %147 = math.tanh %146 : vector<16x32xf32>
    %148 = arith.mulf %143, %147 : vector<16x32xf32>
    %c3_i32 = arith.constant 3 : i32
    %cst_61 = arith.constant dense<0.000000e+00> : vector<16x256xf32>
    %149 = tpu.matmul %148, %71, %cst_61 {dimension_numbers = #tpu.dot_dimension_numbers<[1], [0], [0], [1], [0, 0, 1, 1], [], []>} : vector<16x32xf32>, vector<32x256xf32>, vector<16x256xf32> -> vector<16x256xf32>
    %150 = vector.extract_strided_slice %149 {offsets = [0, 0], sizes = [16, 128], strides = [1, 1]} : vector<16x256xf32> to vector<16x128xf32>
    %151 = vector.extract_strided_slice %149 {offsets = [0, 128], sizes = [16, 128], strides = [1, 1]} : vector<16x256xf32> to vector<16x128xf32>
    %152 = arith.select %74, %150, %151 : vector<16x128xi1>, vector<16x128xf32>
    %153 = arith.index_cast %c3_i32 : i32 to index
    %c0_62 = arith.constant 0 : index
    %c0_63 = arith.constant 0 : index
    %154 = vector.load %arg7[%153, %c0_62, %c0_63] : memref<8x16x128xf32, #tpu.memory_space<vmem>>, vector<1x16x128xf32>
    %155 = vector.shape_cast %154 : vector<1x16x128xf32> to vector<16x128xf32>
    %156 = arith.addf %152, %155 : vector<16x128xf32>
    %157 = math.tanh %156 : vector<16x128xf32>
    %158 = arith.negf %156 : vector<16x128xf32>
    %159 = math.exp %158 : vector<16x128xf32>
    %cst_64 = arith.constant 1.000000e+00 : f32
    %160 = vector.broadcast %cst_64 : f32 to vector<16x128xf32>
    %161 = arith.addf %160, %159 : vector<16x128xf32>
    %162 = arith.divf %160, %161 : vector<16x128xf32>
    %163 = arith.select %80, %157, %162 : vector<16x128xi1>, vector<16x128xf32>
    %164 = vector.extract_strided_slice %163 {offsets = [0, 0], sizes = [16, 32], strides = [1, 1]} : vector<16x128xf32> to vector<16x32xf32>
    %165 = vector.extract_strided_slice %163 {offsets = [0, 32], sizes = [16, 32], strides = [1, 1]} : vector<16x128xf32> to vector<16x32xf32>
    %166 = vector.extract_strided_slice %163 {offsets = [0, 64], sizes = [16, 32], strides = [1, 1]} : vector<16x128xf32> to vector<16x32xf32>
    %167 = vector.extract_strided_slice %163 {offsets = [0, 96], sizes = [16, 32], strides = [1, 1]} : vector<16x128xf32> to vector<16x32xf32>
    %168 = arith.mulf %165, %146 : vector<16x32xf32>
    %169 = arith.mulf %164, %166 : vector<16x32xf32>
    %170 = arith.addf %168, %169 : vector<16x32xf32>
    %171 = math.tanh %170 : vector<16x32xf32>
    %172 = arith.mulf %167, %171 : vector<16x32xf32>
    %c4_i32 = arith.constant 4 : i32
    %cst_65 = arith.constant dense<0.000000e+00> : vector<16x256xf32>
    %173 = tpu.matmul %172, %71, %cst_65 {dimension_numbers = #tpu.dot_dimension_numbers<[1], [0], [0], [1], [0, 0, 1, 1], [], []>} : vector<16x32xf32>, vector<32x256xf32>, vector<16x256xf32> -> vector<16x256xf32>
    %174 = vector.extract_strided_slice %173 {offsets = [0, 0], sizes = [16, 128], strides = [1, 1]} : vector<16x256xf32> to vector<16x128xf32>
    %175 = vector.extract_strided_slice %173 {offsets = [0, 128], sizes = [16, 128], strides = [1, 1]} : vector<16x256xf32> to vector<16x128xf32>
    %176 = arith.select %74, %174, %175 : vector<16x128xi1>, vector<16x128xf32>
    %177 = arith.index_cast %c4_i32 : i32 to index
    %c0_66 = arith.constant 0 : index
    %c0_67 = arith.constant 0 : index
    %178 = vector.load %arg7[%177, %c0_66, %c0_67] : memref<8x16x128xf32, #tpu.memory_space<vmem>>, vector<1x16x128xf32>
    %179 = vector.shape_cast %178 : vector<1x16x128xf32> to vector<16x128xf32>
    %180 = arith.addf %176, %179 : vector<16x128xf32>
    %181 = math.tanh %180 : vector<16x128xf32>
    %182 = arith.negf %180 : vector<16x128xf32>
    %183 = math.exp %182 : vector<16x128xf32>
    %cst_68 = arith.constant 1.000000e+00 : f32
    %184 = vector.broadcast %cst_68 : f32 to vector<16x128xf32>
    %185 = arith.addf %184, %183 : vector<16x128xf32>
    %186 = arith.divf %184, %185 : vector<16x128xf32>
    %187 = arith.select %80, %181, %186 : vector<16x128xi1>, vector<16x128xf32>
    %188 = vector.extract_strided_slice %187 {offsets = [0, 0], sizes = [16, 32], strides = [1, 1]} : vector<16x128xf32> to vector<16x32xf32>
    %189 = vector.extract_strided_slice %187 {offsets = [0, 32], sizes = [16, 32], strides = [1, 1]} : vector<16x128xf32> to vector<16x32xf32>
    %190 = vector.extract_strided_slice %187 {offsets = [0, 64], sizes = [16, 32], strides = [1, 1]} : vector<16x128xf32> to vector<16x32xf32>
    %191 = vector.extract_strided_slice %187 {offsets = [0, 96], sizes = [16, 32], strides = [1, 1]} : vector<16x128xf32> to vector<16x32xf32>
    %192 = arith.mulf %189, %170 : vector<16x32xf32>
    %193 = arith.mulf %188, %190 : vector<16x32xf32>
    %194 = arith.addf %192, %193 : vector<16x32xf32>
    %195 = math.tanh %194 : vector<16x32xf32>
    %196 = arith.mulf %191, %195 : vector<16x32xf32>
    %c5_i32 = arith.constant 5 : i32
    %cst_69 = arith.constant dense<0.000000e+00> : vector<16x256xf32>
    %197 = tpu.matmul %196, %71, %cst_69 {dimension_numbers = #tpu.dot_dimension_numbers<[1], [0], [0], [1], [0, 0, 1, 1], [], []>} : vector<16x32xf32>, vector<32x256xf32>, vector<16x256xf32> -> vector<16x256xf32>
    %198 = vector.extract_strided_slice %197 {offsets = [0, 0], sizes = [16, 128], strides = [1, 1]} : vector<16x256xf32> to vector<16x128xf32>
    %199 = vector.extract_strided_slice %197 {offsets = [0, 128], sizes = [16, 128], strides = [1, 1]} : vector<16x256xf32> to vector<16x128xf32>
    %200 = arith.select %74, %198, %199 : vector<16x128xi1>, vector<16x128xf32>
    %201 = arith.index_cast %c5_i32 : i32 to index
    %c0_70 = arith.constant 0 : index
    %c0_71 = arith.constant 0 : index
    %202 = vector.load %arg7[%201, %c0_70, %c0_71] : memref<8x16x128xf32, #tpu.memory_space<vmem>>, vector<1x16x128xf32>
    %203 = vector.shape_cast %202 : vector<1x16x128xf32> to vector<16x128xf32>
    %204 = arith.addf %200, %203 : vector<16x128xf32>
    %205 = math.tanh %204 : vector<16x128xf32>
    %206 = arith.negf %204 : vector<16x128xf32>
    %207 = math.exp %206 : vector<16x128xf32>
    %cst_72 = arith.constant 1.000000e+00 : f32
    %208 = vector.broadcast %cst_72 : f32 to vector<16x128xf32>
    %209 = arith.addf %208, %207 : vector<16x128xf32>
    %210 = arith.divf %208, %209 : vector<16x128xf32>
    %211 = arith.select %80, %205, %210 : vector<16x128xi1>, vector<16x128xf32>
    %212 = vector.extract_strided_slice %211 {offsets = [0, 0], sizes = [16, 32], strides = [1, 1]} : vector<16x128xf32> to vector<16x32xf32>
    %213 = vector.extract_strided_slice %211 {offsets = [0, 32], sizes = [16, 32], strides = [1, 1]} : vector<16x128xf32> to vector<16x32xf32>
    %214 = vector.extract_strided_slice %211 {offsets = [0, 64], sizes = [16, 32], strides = [1, 1]} : vector<16x128xf32> to vector<16x32xf32>
    %215 = vector.extract_strided_slice %211 {offsets = [0, 96], sizes = [16, 32], strides = [1, 1]} : vector<16x128xf32> to vector<16x32xf32>
    %216 = arith.mulf %213, %194 : vector<16x32xf32>
    %217 = arith.mulf %212, %214 : vector<16x32xf32>
    %218 = arith.addf %216, %217 : vector<16x32xf32>
    %219 = math.tanh %218 : vector<16x32xf32>
    %220 = arith.mulf %215, %219 : vector<16x32xf32>
    %c6_i32 = arith.constant 6 : i32
    %cst_73 = arith.constant dense<0.000000e+00> : vector<16x256xf32>
    %221 = tpu.matmul %220, %71, %cst_73 {dimension_numbers = #tpu.dot_dimension_numbers<[1], [0], [0], [1], [0, 0, 1, 1], [], []>} : vector<16x32xf32>, vector<32x256xf32>, vector<16x256xf32> -> vector<16x256xf32>
    %222 = vector.extract_strided_slice %221 {offsets = [0, 0], sizes = [16, 128], strides = [1, 1]} : vector<16x256xf32> to vector<16x128xf32>
    %223 = vector.extract_strided_slice %221 {offsets = [0, 128], sizes = [16, 128], strides = [1, 1]} : vector<16x256xf32> to vector<16x128xf32>
    %224 = arith.select %74, %222, %223 : vector<16x128xi1>, vector<16x128xf32>
    %225 = arith.index_cast %c6_i32 : i32 to index
    %c0_74 = arith.constant 0 : index
    %c0_75 = arith.constant 0 : index
    %226 = vector.load %arg7[%225, %c0_74, %c0_75] : memref<8x16x128xf32, #tpu.memory_space<vmem>>, vector<1x16x128xf32>
    %227 = vector.shape_cast %226 : vector<1x16x128xf32> to vector<16x128xf32>
    %228 = arith.addf %224, %227 : vector<16x128xf32>
    %229 = math.tanh %228 : vector<16x128xf32>
    %230 = arith.negf %228 : vector<16x128xf32>
    %231 = math.exp %230 : vector<16x128xf32>
    %cst_76 = arith.constant 1.000000e+00 : f32
    %232 = vector.broadcast %cst_76 : f32 to vector<16x128xf32>
    %233 = arith.addf %232, %231 : vector<16x128xf32>
    %234 = arith.divf %232, %233 : vector<16x128xf32>
    %235 = arith.select %80, %229, %234 : vector<16x128xi1>, vector<16x128xf32>
    %236 = vector.extract_strided_slice %235 {offsets = [0, 0], sizes = [16, 32], strides = [1, 1]} : vector<16x128xf32> to vector<16x32xf32>
    %237 = vector.extract_strided_slice %235 {offsets = [0, 32], sizes = [16, 32], strides = [1, 1]} : vector<16x128xf32> to vector<16x32xf32>
    %238 = vector.extract_strided_slice %235 {offsets = [0, 64], sizes = [16, 32], strides = [1, 1]} : vector<16x128xf32> to vector<16x32xf32>
    %239 = vector.extract_strided_slice %235 {offsets = [0, 96], sizes = [16, 32], strides = [1, 1]} : vector<16x128xf32> to vector<16x32xf32>
    %240 = arith.mulf %237, %218 : vector<16x32xf32>
    %241 = arith.mulf %236, %238 : vector<16x32xf32>
    %242 = arith.addf %240, %241 : vector<16x32xf32>
    %243 = math.tanh %242 : vector<16x32xf32>
    %244 = arith.mulf %239, %243 : vector<16x32xf32>
    %c7_i32 = arith.constant 7 : i32
    %cst_77 = arith.constant dense<0.000000e+00> : vector<16x256xf32>
    %245 = tpu.matmul %244, %71, %cst_77 {dimension_numbers = #tpu.dot_dimension_numbers<[1], [0], [0], [1], [0, 0, 1, 1], [], []>} : vector<16x32xf32>, vector<32x256xf32>, vector<16x256xf32> -> vector<16x256xf32>
    %246 = vector.extract_strided_slice %245 {offsets = [0, 0], sizes = [16, 128], strides = [1, 1]} : vector<16x256xf32> to vector<16x128xf32>
    %247 = vector.extract_strided_slice %245 {offsets = [0, 128], sizes = [16, 128], strides = [1, 1]} : vector<16x256xf32> to vector<16x128xf32>
    %248 = arith.select %74, %246, %247 : vector<16x128xi1>, vector<16x128xf32>
    %249 = arith.index_cast %c7_i32 : i32 to index
    %c0_78 = arith.constant 0 : index
    %c0_79 = arith.constant 0 : index
    %250 = vector.load %arg7[%249, %c0_78, %c0_79] : memref<8x16x128xf32, #tpu.memory_space<vmem>>, vector<1x16x128xf32>
    %251 = vector.shape_cast %250 : vector<1x16x128xf32> to vector<16x128xf32>
    %252 = arith.addf %248, %251 : vector<16x128xf32>
    %253 = math.tanh %252 : vector<16x128xf32>
    %254 = arith.negf %252 : vector<16x128xf32>
    %255 = math.exp %254 : vector<16x128xf32>
    %cst_80 = arith.constant 1.000000e+00 : f32
    %256 = vector.broadcast %cst_80 : f32 to vector<16x128xf32>
    %257 = arith.addf %256, %255 : vector<16x128xf32>
    %258 = arith.divf %256, %257 : vector<16x128xf32>
    %259 = arith.select %80, %253, %258 : vector<16x128xi1>, vector<16x128xf32>
    %260 = vector.extract_strided_slice %259 {offsets = [0, 0], sizes = [16, 32], strides = [1, 1]} : vector<16x128xf32> to vector<16x32xf32>
    %261 = vector.extract_strided_slice %259 {offsets = [0, 32], sizes = [16, 32], strides = [1, 1]} : vector<16x128xf32> to vector<16x32xf32>
    %262 = vector.extract_strided_slice %259 {offsets = [0, 64], sizes = [16, 32], strides = [1, 1]} : vector<16x128xf32> to vector<16x32xf32>
    %263 = vector.extract_strided_slice %259 {offsets = [0, 96], sizes = [16, 32], strides = [1, 1]} : vector<16x128xf32> to vector<16x32xf32>
    %264 = arith.mulf %261, %242 : vector<16x32xf32>
    %265 = arith.mulf %260, %262 : vector<16x32xf32>
    %266 = arith.addf %264, %265 : vector<16x32xf32>
    %267 = math.tanh %266 : vector<16x32xf32>
    %268 = arith.mulf %263, %267 : vector<16x32xf32>
    %c7_i32_81 = arith.constant 7 : i32
    %269 = vector.extract_strided_slice %268 {offsets = [0, 0], sizes = [8, 32], strides = [1, 1]} : vector<16x32xf32> to vector<8x32xf32>
    %270 = tpu.concatenate %269, %100 in 1 : vector<8x32xf32>, vector<8x32xf32> -> vector<8x64xf32>
    %c0_82 = arith.constant 0 : index
    %c0_83 = arith.constant 0 : index
    %271 = vector.load %arg4[%c0_82, %c0_83] : memref<64x2xf32, #tpu.memory_space<vmem>>, vector<64x2xf32>
    %cst_84 = arith.constant dense<0.000000e+00> : vector<8x2xf32>
    %272 = tpu.matmul %270, %271, %cst_84 {dimension_numbers = #tpu.dot_dimension_numbers<[1], [0], [0], [1], [0, 0, 1, 1], [], []>} : vector<8x64xf32>, vector<64x2xf32>, vector<8x2xf32> -> vector<8x2xf32>
    %c0_85 = arith.constant 0 : index
    %c0_86 = arith.constant 0 : index
    %273 = vector.load %arg5[%c0_85, %c0_86] : memref<1x2xf32, #tpu.memory_space<vmem>>, vector<1x2xf32>
    %274 = vector.broadcast %273 : vector<1x2xf32> to vector<8x2xf32>
    %275 = arith.addf %272, %274 : vector<8x2xf32>
    %cst_87 = arith.constant dense<0xFF800000> : vector<8xf32>
    %276 = vector.multi_reduction <maximumf>, %275, %cst_87 [1] : vector<8x2xf32> to vector<8xf32>
    %277 = vector.shape_cast %276 : vector<8xf32> to vector<8x1xf32>
    %278 = vector.broadcast %277 : vector<8x1xf32> to vector<8x2xf32>
    %279 = arith.subf %275, %278 : vector<8x2xf32>
    %280 = math.exp %279 : vector<8x2xf32>
    %cst_88 = arith.constant dense<0.000000e+00> : vector<8xf32>
    %281 = vector.multi_reduction <add>, %280, %cst_88 [1] : vector<8x2xf32> to vector<8xf32>
    %282 = vector.shape_cast %281 : vector<8xf32> to vector<8x1xf32>
    %283 = math.log %282 : vector<8x1xf32>
    %284 = arith.addf %283, %277 : vector<8x1xf32>
    %285 = vector.broadcast %284 : vector<8x1xf32> to vector<8x2xf32>
    %286 = arith.subf %275, %285 : vector<8x2xf32>
    %c0_89 = arith.constant 0 : index
    %c0_90 = arith.constant 0 : index
    %287 = vector.load %arg6[%c0_89, %c0_90] : memref<8x2xf32, #tpu.memory_space<vmem>>, vector<8x2xf32>
    tpu.vector_store %arg6[%c0_89, %c0_90], %286 {strides = array<i32>} : memref<8x2xf32, #tpu.memory_space<vmem>>, vector<8x2xf32>,
    return
  }
}

</mosaic_0001>

<llo_original>
// kernel: bilstm_sentiment_forward.1
$region0: #{bilstm_sentiment_forward.1}
  #allocation0 [shape = 'u32[]', space=smem, size = 0x4, offset = 0x4, fixed_abs, tag = 'smem constant byte address 0x4 - core index']
  #allocation1 [shape = 'u32[144,128]{1,0:T(1,128)}', space=vmem, size = 0x12000, scoped, tag = 'internal scratch']
  #allocation2 [shape = 'f32[8,16,128]{2,1,0:T(8,128)}', space=vmem, size = 0x10000, scoped, tag = 'scratch operand']
  %s0 = inlined_call_operand.vmem [shape: f32[8,8,32], index: 0, kind: input, shape index: {}]
  %s1 = inlined_call_operand.hbm [shape: f32[32,256], index: 1, kind: input, shape index: {}]
  %s2 = inlined_call_operand.vmem [shape: f32[1,256], index: 2, kind: input, shape index: {}]
  %s3 = inlined_call_operand.hbm [shape: f32[32,256], index: 3, kind: input, shape index: {}]
  %s4 = inlined_call_operand.vmem [shape: f32[64,2], index: 4, kind: input, shape index: {}]
  %s5 = inlined_call_operand.vmem [shape: f32[1,2], index: 5, kind: input, shape index: {}]
  %s6 = inlined_call_operand.vmem [shape: f32[8,2], index: 6, kind: output, shape index: {}]
  %s7 = sld [smem:[#allocation0]]
  $region42: #{bilstm_sentiment_forward.1} parent=0
    _
  %s9 = ssub.s32 1, %s7
  %s10 = scalar_select 0, %s9, %s7
  $region1: #{bilstm_sentiment_forward.1} parent=0
    #allocation3 [shape = 'u8[32768]{0}', space=vmem, size = 0x8000, scoped, tag = 'input window, operand 1, single buffered']
    #allocation4 [shape = 's32[1]{0}', space=sflag, size = 0x4, scoped, tag = 'scoped memory for bilstm_sentiment_forward.1']
    #allocation5 [shape = 'u8[32768]{0}', space=vmem, size = 0x8000, scoped, tag = 'input window, operand 3, single buffered']
    #allocation6 [shape = 's32[1]{0}', space=sflag, size = 0x4, scoped, tag = 'scoped memory for bilstm_sentiment_forward.1']
    %11 = vsyncpa [#allocation4], 0
    %12 = vsyncpa [#allocation6], 0
    // Predicated region
    $region2: #{bilstm_sentiment_forward.1} parent=1 // pred_check
      _
    $region3: #{bilstm_sentiment_forward.1} parent=1 // pred_check_branch
      %14 = sbr.rel (0) target = $region5
    $region4: #{bilstm_sentiment_forward.1} parent=1 // pred_region
      _
    $region5: #{bilstm_sentiment_forward.1} parent=1 // pred_fallthru
      _
    // Predicated region
    $region6: #{bilstm_sentiment_forward.1} parent=1 // pred_check
      _
    $region7: #{bilstm_sentiment_forward.1} parent=1 // pred_check_branch
      %16 = sbr.rel (0) target = $region9
    $region8: #{bilstm_sentiment_forward.1} parent=1 // pred_region
      %s18 = ssub.s32 1024, 1024
      %19 = vsyncadd [#allocation4], %s18
      %s20 = sshll.u32 [#allocation3], 4
      %s21 = int_to_ptr.vmem [resolvable:$true] %s20
      %26 = dma.hbm_to_vmem [thread:$0]  %s1, 1024, %s21, [#allocation4], 256, 256, 16
    $region9: #{bilstm_sentiment_forward.1} parent=1 // pred_fallthru
      _
    // Predicated region
    $region10: #{bilstm_sentiment_forward.1} parent=1 // pred_check
      _
    $region11: #{bilstm_sentiment_forward.1} parent=1 // pred_check_branch
      %28 = sbr.rel (0) target = $region13
    $region12: #{bilstm_sentiment_forward.1} parent=1 // pred_region
      _
    $region13: #{bilstm_sentiment_forward.1} parent=1 // pred_fallthru
      _
    // Predicated region
    $region14: #{bilstm_sentiment_forward.1} parent=1 // pred_check
      _
    $region15: #{bilstm_sentiment_forward.1} parent=1 // pred_check_branch
      %30 = sbr.rel (0) target = $region17
    $region16: #{bilstm_sentiment_forward.1} parent=1 // pred_region
      %s32 = ssub.s32 1024, 1024
      %33 = vsyncadd [#allocation6], %s32
      %s34 = sshll.u32 [#allocation5], 4
      %s35 = int_to_ptr.vmem [resolvable:$true] %s34
      %40 = dma.hbm_to_vmem [thread:$0]  %s3, 1024, %s35, [#allocation6], 256, 256, 16
    $region17: #{bilstm_sentiment_forward.1} parent=1 // pred_fallthru
      _
    // Predicated region
    $region18: #{bilstm_sentiment_forward.1} parent=1 // pred_check
      _
    $region19: #{bilstm_sentiment_forward.1} parent=1 // pred_check_branch
      %42 = sbr.rel (0) target = $region21
    $region20: #{bilstm_sentiment_forward.1} parent=1 // pred_region
      _
    $region21: #{bilstm_sentiment_forward.1} parent=1 // pred_fallthru
      _
    // Predicated region
    $region22: #{bilstm_sentiment_forward.1} parent=1 // pred_check
      _
    $region23: #{bilstm_sentiment_forward.1} parent=1 // pred_check_branch
      %44 = sbr.rel (0) target = $region25
    $region24: #{bilstm_sentiment_forward.1} parent=1 // pred_region
      _
    $region25: #{bilstm_sentiment_forward.1} parent=1 // pred_fallthru
      _
    // Predicated region
    $region26: #{bilstm_sentiment_forward.1} parent=1 // pred_check
      _
    $region27: #{bilstm_sentiment_forward.1} parent=1 // pred_check_branch
      %46 = sbr.rel (0) target = $region29
    $region28: #{bilstm_sentiment_forward.1} parent=1 // pred_region
      %47 = dma.done [#allocation4], 1024
    $region29: #{bilstm_sentiment_forward.1} parent=1 // pred_fallthru
      _
    // Predicated region
    $region30: #{bilstm_sentiment_forward.1} parent=1 // pred_check
      _
    $region31: #{bilstm_sentiment_forward.1} parent=1 // pred_check_branch
      %49 = sbr.rel (0) target = $region33
    $region32: #{bilstm_sentiment_forward.1} parent=1 // pred_region
      %50 = dma.done [#allocation6], 1024
    $region33: #{bilstm_sentiment_forward.1} parent=1 // pred_fallthru
      _
    %v51 = vld [vmem:[%s0] sm:$0xff]
    %v52 = vld [vmem:[%s0 + $0x8] sm:$0xff]
    %v53 = vld [vmem:[%s0 + $0x10] sm:$0xff]
    %v54 = vld [vmem:[%s0 + $0x18] sm:$0xff]
    %v55 = vld [vmem:[%s0 + $0x20] sm:$0xff]
    %v56 = vld [vmem:[%s0 + $0x28] sm:$0xff]
    %v57 = vld [vmem:[%s0 + $0x30] sm:$0xff]
    %v58 = vld [vmem:[%s0 + $0x38] sm:$0xff]
    %v59 = vld [vmem:[#allocation3] sm:$0xff]
    %v60 = vld [vmem:[#allocation3 + $0x8] sm:$0xff]
    %v61 = vld [vmem:[#allocation3 + $0x10] sm:$0xff]
    %v62 = vld [vmem:[#allocation3 + $0x18] sm:$0xff]
    %v63 = vld [vmem:[#allocation3 + $0x20] sm:$0xff]
    %v64 = vld [vmem:[#allocation3 + $0x28] sm:$0xff]
    %v65 = vld [vmem:[#allocation3 + $0x30] sm:$0xff]
    %v66 = vld [vmem:[#allocation3 + $0x38] sm:$0xff]
    %v67 = vld [vmem:[%s2] sm:$0x3]
    %v69 = vlaneseq
    %v70 = vshrl.u32 %v69, 7
    %v71 = vsub.s32 0, %v70
    %v72 = vrot.slane %v67, %v71
    %v73 = vlaneseq
    %v74 = vshrl.u32 %v73, 7
    %v75 = vsub.s32 1, %v74
    %v76 = vrot.slane %v67, %v75
    %vm79 = vcmask 261120
    %v81 = vsel %vm79, %v51, 0
    %v84 = vsel %vm79, %v52, 0
    %v87 = vsel %vm79, %v53, 0
    %v90 = vsel %vm79, %v54, 0
    %v93 = vsel %vm79, %v55, 0
    %v96 = vsel %vm79, %v56, 0
    %v99 = vsel %vm79, %v57, 0
    %v102 = vsel %vm79, %v58, 0
    %104 = vmatprep.subr.mxu0 %v60
    %105 = vmatpush1.msra.mxu0 %v59
    %106 = vmatprep.subr.mxu0 %v62
    %107 = vmatpush1.msra.mxu0 %v61
    %108 = vmatprep.subr.mxu0 %v64
    %109 = vmatpush1.msra.mxu0 %v63
    %110 = vmatprep.subr.mxu0 %v66
    %111 = vmatpush1.msra.mxu0 %v65
    %112 = vmatprep.subr.mxu0 0.0
    %113 = vmatpush1.msra.mxu0 0.0
    %114 = vmatprep.subr.mxu0 0.0
    %115 = vmatpush1.msra.mxu0 0.0
    %116 = vmatprep.subr.mxu0 0.0
    %117 = vmatpush1.msra.mxu0 0.0
    %118 = vmatprep.subr.mxu0 0.0
    %119 = vmatpush1.msra.mxu0 0.0
    %120 = vmatprep.subr.mxu0 0.0
    %121 = vmatpush1.msra.mxu0 0.0
    %122 = vmatprep.subr.mxu0 0.0
    %123 = vmatpush1.msra.mxu0 0.0
    %124 = vmatprep.subr.mxu0 0.0
    %125 = vmatpush1.msra.mxu0 0.0
    %126 = vmatprep.subr.mxu0 0.0
    %127 = vmatpush1.msra.mxu0 0.0
    %128 = vmatprep.subr.mxu0 0.0
    %129 = vmatpush1.msra.mxu0 0.0
    %130 = vmatprep.subr.mxu0 0.0
    %131 = vmatpush1.msra.mxu0 0.0
    %132 = vmatprep.subr.mxu0 0.0
    %133 = vmatpush1.msra.mxu0 0.0
    %134 = vmatprep.subr.mxu0 0.0
    %135 = vmatpush1.msra.mxu0 0.0
    %136 = vmatprep.subr.mxu0 0.0
    %137 = vmatpush1.msra.mxu0 0.0
    %138 = vmatprep.subr.mxu0 0.0
    %139 = vmatpush1.msra.mxu0 0.0
    %140 = vmatprep.subr.mxu0 0.0
    %141 = vmatpush1.msra.mxu0 0.0
    %142 = vmatprep.subr.mxu0 0.0
    %143 = vmatpush1.msra.mxu0 0.0
    %144 = vmatprep.subr.mxu0 0.0
    %145 = vmatpush1.msra.mxu0 0.0
    %146 = vmatprep.subr.mxu0 0.0
    %147 = vmatpush1.msra.mxu0 0.0
    %148 = vmatprep.subr.mxu0 0.0
    %149 = vmatpush1.msra.mxu0 0.0
    %150 = vmatprep.subr.mxu0 0.0
    %151 = vmatpush1.msra.mxu0 0.0
    %152 = vmatprep.subr.mxu0 0.0
    %153 = vmatpush1.msra.mxu0 0.0
    %154 = vmatprep.subr.mxu0 0.0
    %155 = vmatpush1.msra.mxu0 0.0
    %156 = vmatprep.subr.mxu0 0.0
    %157 = vmatpush1.msra.mxu0 0.0
    %158 = vmatprep.subr.mxu0 0.0
    %159 = vmatpush1.msra.mxu0 0.0
    %160 = vmatprep.subr.mxu0 0.0
    %161 = vmatpush1.msra.mxu0 0.0
    %162 = vmatprep.subr.mxu0 0.0
    %163 = vmatpush1.msra.mxu0 0.0
    %164 = vmatprep.subr.mxu0 0.0
    %165 = vmatpush1.msra.mxu0 0.0
    %166 = vmatprep.subr.mxu0 0.0
    %167 = vmatpush1.msra.mxu0 0.0
    %168 = vmatprep.mubr.f32.mxu0 0.0
    %169 = vmatmul.mubr.f32.gmra.mrb[0].mxu0 %v81
    %v170 = vpop.f32.mrb[0].mxu0
    %v171 = vadd.f32 %v72, %v170
    %v172 = vpop.f32.mrb[0].mxu0
    %v173 = vadd.f32 %v76, %v172
    %174 = vmatprep.mubr.f32.mxu0 0.0
    %175 = vmatmul.mubr.f32.gmra.mrb[0].mxu0 %v84
    %v176 = vpop.f32.mrb[0].mxu0
    %v177 = vadd.f32 %v72, %v176
    %v178 = vpop.f32.mrb[0].mxu0
    %v179 = vadd.f32 %v76, %v178
    %180 = vmatprep.mubr.f32.mxu0 0.0
    %181 = vmatmul.mubr.f32.gmra.mrb[0].mxu0 %v87
    %v182 = vpop.f32.mrb[0].mxu0
    %v183 = vadd.f32 %v72, %v182
    %v184 = vpop.f32.mrb[0].mxu0
    %v185 = vadd.f32 %v76, %v184
    %186 = vmatprep.mubr.f32.mxu0 0.0
    %187 = vmatmul.mubr.f32.gmra.mrb[0].mxu0 %v90
    %v188 = vpop.f32.mrb[0].mxu0
    %v189 = vadd.f32 %v72, %v188
    %v190 = vpop.f32.mrb[0].mxu0
    %v191 = vadd.f32 %v76, %v190
    %192 = vmatprep.mubr.f32.mxu0 0.0
    %193 = vmatmul.mubr.f32.gmra.mrb[0].mxu0 %v93
    %v194 = vpop.f32.mrb[0].mxu0
    %v195 = vadd.f32 %v72, %v194
    %v196 = vpop.f32.mrb[0].mxu0
    %v197 = vadd.f32 %v76, %v196
    %198 = vmatprep.mubr.f32.mxu0 0.0
    %199 = vmatmul.mubr.f32.gmra.mrb[0].mxu0 %v96
    %v200 = vpop.f32.mrb[0].mxu0
    %v201 = vadd.f32 %v72, %v200
    %v202 = vpop.f32.mrb[0].mxu0
    %v203 = vadd.f32 %v76, %v202
    %204 = vmatprep.mubr.f32.mxu0 0.0
    %205 = vmatmul.mubr.f32.gmra.mrb[0].mxu0 %v99
    %v206 = vpop.f32.mrb[0].mxu0
    %v207 = vadd.f32 %v72, %v206
    %v208 = vpop.f32.mrb[0].mxu0
    %v209 = vadd.f32 %v76, %v208
    %210 = vmatprep.mubr.f32.mxu0 0.0
    %211 = vmatmul.mubr.f32.gmra.mrb[0].mxu0 %v102
    %v212 = vpop.f32.mrb[0].mxu0
    %v213 = vadd.f32 %v72, %v212
    %v214 = vpop.f32.mrb[0].mxu0
    %v215 = vadd.f32 %v76, %v214
    %216 = vdwg.mxu0
    %217 = vst [vmem:[#allocation2] sm:$0xff] %v171
    %218 = vst [vmem:[#allocation2 + $0x8] sm:$0xff] %v215
    %s219 = scalar_lea.vmem [#allocation2], 16
    %220 = vst [vmem:[%s219] sm:$0xff] %v177
    %221 = vst [vmem:[%s219 + $0x8] sm:$0xff] %v209
    %s222 = scalar_lea.vmem [#allocation2], 32
    %223 = vst [vmem:[%s222] sm:$0xff] %v183
    %224 = vst [vmem:[%s222 + $0x8] sm:$0xff] %v203
    %s225 = scalar_lea.vmem [#allocation2], 48
    %226 = vst [vmem:[%s225] sm:$0xff] %v189
    %227 = vst [vmem:[%s225 + $0x8] sm:$0xff] %v197
    %s228 = scalar_lea.vmem [#allocation2], 64
    %229 = vst [vmem:[%s228] sm:$0xff] %v195
    %230 = vst [vmem:[%s228 + $0x8] sm:$0xff] %v191
    %s231 = scalar_lea.vmem [#allocation2], 80
    %232 = vst [vmem:[%s231] sm:$0xff] %v201
    %233 = vst [vmem:[%s231 + $0x8] sm:$0xff] %v185
    %s234 = scalar_lea.vmem [#allocation2], 96
    %235 = vst [vmem:[%s234] sm:$0xff] %v207
    %236 = vst [vmem:[%s234 + $0x8] sm:$0xff] %v179
    %s237 = scalar_lea.vmem [#allocation2], 112
    %238 = vst [vmem:[%s237] sm:$0xff] %v213
    %239 = vst [vmem:[%s237 + $0x8] sm:$0xff] %v173
    %v240 = vld [vmem:[#allocation5] sm:$0xff]
    %v241 = vld [vmem:[#allocation5 + $0x8] sm:$0xff]
    %v242 = vld [vmem:[#allocation5 + $0x10] sm:$0xff]
    %v243 = vld [vmem:[#allocation5 + $0x18] sm:$0xff]
    %v244 = vld [vmem:[#allocation5 + $0x20] sm:$0xff]
    %v245 = vld [vmem:[#allocation5 + $0x28] sm:$0xff]
    %v246 = vld [vmem:[#allocation5 + $0x30] sm:$0xff]
    %v247 = vld [vmem:[#allocation5 + $0x38] sm:$0xff]
    %v248 = vlaneseq
    %v249 = vshrl.u32 %v248, 7
    %v250 = vadd.s32 %v249, 8
    %vm251 = vcmp.lt.s32.totalorder %v249, 8
    %vm252 = vcmp.lt.s32.totalorder %v250, 8
    %v253 = vlaneseq
    %v254 = vand.u32 %v253, 127
    %vm255 = vcmp.ge.s32.totalorder %v254, 64
    %vm256 = vcmp.lt.s32.totalorder %v254, 96
    %vm257 = vmand %vm255, %vm256
    %v258 = vld [vmem:[#allocation2] sm:$0xff]
    %v259 = vld [vmem:[#allocation2 + $0x8] sm:$0xff]
    %v260 = vtanh.pop %v258
    %v261 = vtanh.pop %v259
    %v262 = vxor.u32 %v258, 2147483648
    %v263 = vxor.u32 %v259, 2147483648
    %v264 = vmul.f32 %v262, 1.442695
    %v265 = vpow.pop %v264
    %v266 = vmul.f32 %v263, 1.442695
    %v267 = vpow.pop %v266
    %v268 = vadd.f32 %v265, 1.0
    %v269 = vadd.f32 %v267, 1.0
    %v270 = vrcp.pop %v268
    %v271 = vmul.f32 1.0, %v270
    %v272 = vrcp.pop %v269
    %v273 = vmul.f32 1.0, %v272
    %v274 = vsel %vm257, %v260, %v271
    %v275 = vsel %vm257, %v261, %v273
    %v276 = vmul.f32 %v274, 0.0
    %v277 = vmul.f32 %v275, 0.0
    %280 = vrot.lane.b32.xlu0 %v274, 64
    %v281 = vpop.permute.xlu0 %280
    %282 = vrot.lane.b32.xlu0 %v275, 64
    %v283 = vpop.permute.xlu0 %282
    %v286 = vmul.f32 %v274, %v281
    %v287 = vmul.f32 %v275, %v283
    %290 = vrot.lane.b32.xlu0 %v286, 32
    %v291 = vpop.permute.xlu0 %290
    %292 = vrot.lane.b32.xlu0 %v287, 32
    %v293 = vpop.permute.xlu0 %292
    %v296 = vadd.f32 %v276, %v291
    %v297 = vadd.f32 %v277, %v293
    %v298 = vtanh.pop %v296
    %v299 = vtanh.pop %v297
    %302 = vrot.lane.b32.xlu0 %v298, 64
    %v303 = vpop.permute.xlu0 %302
    %304 = vrot.lane.b32.xlu0 %v299, 64
    %v305 = vpop.permute.xlu0 %304
    %v308 = vmul.f32 %v274, %v303
    %v309 = vmul.f32 %v275, %v305
    %312 = vrot.lane.b32.xlu0 %v308, 32
    %v313 = vpop.permute.xlu0 %312
    %314 = vrot.lane.b32.xlu0 %v309, 32
    %v315 = vpop.permute.xlu0 %314
    %v316 = vsel %vm79, %v313, 0
    %v318 = vsel %vm79, %v315, 0
    %320 = vmatprep.subr.mxu0 %v241
    %321 = vmatpush1.msra.mxu0 %v240
    %322 = vmatprep.subr.mxu0 %v243
    %323 = vmatpush1.msra.mxu0 %v242
    %324 = vmatprep.subr.mxu0 %v245
    %325 = vmatpush1.msra.mxu0 %v244
    %326 = vmatprep.subr.mxu0 %v247
    %327 = vmatpush1.msra.mxu0 %v246
    %328 = vmatprep.subr.mxu0 0.0
    %329 = vmatpush1.msra.mxu0 0.0
    %330 = vmatprep.subr.mxu0 0.0
    %331 = vmatpush1.msra.mxu0 0.0
    %332 = vmatprep.subr.mxu0 0.0
    %333 = vmatpush1.msra.mxu0 0.0
    %334 = vmatprep.subr.mxu0 0.0
    %335 = vmatpush1.msra.mxu0 0.0
    %336 = vmatprep.subr.mxu0 0.0
    %337 = vmatpush1.msra.mxu0 0.0
    %338 = vmatprep.subr.mxu0 0.0
    %339 = vmatpush1.msra.mxu0 0.0
    %340 = vmatprep.subr.mxu0 0.0
    %341 = vmatpush1.msra.mxu0 0.0
    %342 = vmatprep.subr.mxu0 0.0
    %343 = vmatpush1.msra.mxu0 0.0
    %344 = vmatprep.subr.mxu0 0.0
    %345 = vmatpush1.msra.mxu0 0.0
    %346 = vmatprep.subr.mxu0 0.0
    %347 = vmatpush1.msra.mxu0 0.0
    %348 = vmatprep.subr.mxu0 0.0
    %349 = vmatpush1.msra.mxu0 0.0
    %350 = vmatprep.subr.mxu0 0.0
    %351 = vmatpush1.msra.mxu0 0.0
    %352 = vmatprep.subr.mxu0 0.0
    %353 = vmatpush1.msra.mxu0 0.0
    %354 = vmatprep.subr.mxu0 0.0
    %355 = vmatpush1.msra.mxu0 0.0
    %356 = vmatprep.subr.mxu0 0.0
    %357 = vmatpush1.msra.mxu0 0.0
    %358 = vmatprep.subr.mxu0 0.0
    %359 = vmatpush1.msra.mxu0 0.0
    %360 = vmatprep.subr.mxu0 0.0
    %361 = vmatpush1.msra.mxu0 0.0
    %362 = vmatprep.subr.mxu0 0.0
    %363 = vmatpush1.msra.mxu0 0.0
    %364 = vmatprep.subr.mxu0 0.0
    %365 = vmatpush1.msra.mxu0 0.0
    %366 = vmatprep.subr.mxu0 0.0
    %367 = vmatpush1.msra.mxu0 0.0
    %368 = vmatprep.subr.mxu0 0.0
    %369 = vmatpush1.msra.mxu0 0.0
    %370 = vmatprep.subr.mxu0 0.0
    %371 = vmatpush1.msra.mxu0 0.0
    %372 = vmatprep.subr.mxu0 0.0
    %373 = vmatpush1.msra.mxu0 0.0
    %374 = vmatprep.subr.mxu0 0.0
    %375 = vmatpush1.msra.mxu0 0.0
    %376 = vmatprep.subr.mxu0 0.0
    %377 = vmatpush1.msra.mxu0 0.0
    %378 = vmatprep.subr.mxu0 0.0
    %379 = vmatpush1.msra.mxu0 0.0
    %380 = vmatprep.subr.mxu0 0.0
    %381 = vmatpush1.msra.mxu0 0.0
    %382 = vmatprep.subr.mxu0 0.0
    %383 = vmatpush1.msra.mxu0 0.0
    %384 = vmatprep.mubr.f32.mxu0 0.0
    %385 = vmatmul.mubr.f32.gmra.mrb[0].mxu0 %v316
    %v386 = vpop.f32.mrb[0].mxu0
    %v387 = vadd.f32 0.0, %v386
    %v388 = vpop.f32.mrb[0].mxu0
    %v389 = vadd.f32 0.0, %v388
    %390 = vmatprep.mubr.f32.mxu0 0.0
    %391 = vmatmul.mubr.f32.gmra.mrb[0].mxu0 %v318
    %v392 = vpop.f32.mrb[0].mxu0
    %v393 = vadd.f32 0.0, %v392
    %v394 = vpop.f32.mrb[0].mxu0
    %v395 = vadd.f32 0.0, %v394
    %396 = vdwg.mxu0
    %v397 = vsel %vm251, %v387, %v389
    %v398 = vsel %vm252, %v393, %v395
    %v399 = vld [vmem:[%s219] sm:$0xff]
    %v400 = vld [vmem:[%s219 + $0x8] sm:$0xff]
    %v401 = vadd.f32 %v397, %v399
    %v402 = vadd.f32 %v398, %v400
    %v403 = vtanh.pop %v401
    %v404 = vtanh.pop %v402
    %v405 = vxor.u32 %v401, 2147483648
    %v406 = vxor.u32 %v402, 2147483648
    %v407 = vmul.f32 %v405, 1.442695
    %v408 = vpow.pop %v407
    %v409 = vmul.f32 %v406, 1.442695
    %v410 = vpow.pop %v409
    %v411 = vadd.f32 %v408, 1.0
    %v412 = vadd.f32 %v410, 1.0
    %v413 = vrcp.pop %v411
    %v414 = vmul.f32 1.0, %v413
    %v415 = vrcp.pop %v412
    %v416 = vmul.f32 1.0, %v415
    %v417 = vsel %vm257, %v403, %v414
    %v418 = vsel %vm257, %v404, %v416
    %v419 = vmul.f32 %v417, %v296
    %v420 = vmul.f32 %v418, %v297
    %423 = vrot.lane.b32.xlu0 %v417, 64
    %v424 = vpop.permute.xlu0 %423
    %425 = vrot.lane.b32.xlu0 %v418, 64
    %v426 = vpop.permute.xlu0 %425
    %v429 = vmul.f32 %v417, %v424
    %v430 = vmul.f32 %v418, %v426
    %433 = vrot.lane.b32.xlu0 %v429, 32
    %v434 = vpop.permute.xlu0 %433
    %435 = vrot.lane.b32.xlu0 %v430, 32
    %v436 = vpop.permute.xlu0 %435
    %v439 = vadd.f32 %v419, %v434
    %v440 = vadd.f32 %v420, %v436
    %v441 = vtanh.pop %v439
    %v442 = vtanh.pop %v440
    %445 = vrot.lane.b32.xlu0 %v441, 64
    %v446 = vpop.permute.xlu0 %445
    %447 = vrot.lane.b32.xlu0 %v442, 64
    %v448 = vpop.permute.xlu0 %447
    %v451 = vmul.f32 %v417, %v446
    %v452 = vmul.f32 %v418, %v448
    %455 = vrot.lane.b32.xlu0 %v451, 32
    %v456 = vpop.permute.xlu0 %455
    %457 = vrot.lane.b32.xlu0 %v452, 32
    %v458 = vpop.permute.xlu0 %457
    %v459 = vsel %vm79, %v456, 0
    %v461 = vsel %vm79, %v458, 0
    %463 = vmatprep.subr.mxu0 %v241
    %464 = vmatpush1.msra.mxu0 %v240
    %465 = vmatprep.subr.mxu0 %v243
    %466 = vmatpush1.msra.mxu0 %v242
    %467 = vmatprep.subr.mxu0 %v245
    %468 = vmatpush1.msra.mxu0 %v244
    %469 = vmatprep.subr.mxu0 %v247
    %470 = vmatpush1.msra.mxu0 %v246
    %471 = vmatprep.subr.mxu0 0.0
    %472 = vmatpush1.msra.mxu0 0.0
    %473 = vmatprep.subr.mxu0 0.0
    %474 = vmatpush1.msra.mxu0 0.0
    %475 = vmatprep.subr.mxu0 0.0
    %476 = vmatpush1.msra.mxu0 0.0
    %477 = vmatprep.subr.mxu0 0.0
    %478 = vmatpush1.msra.mxu0 0.0
    %479 = vmatprep.subr.mxu0 0.0
    %480 = vmatpush1.msra.mxu0 0.0
    %481 = vmatprep.subr.mxu0 0.0
    %482 = vmatpush1.msra.mxu0 0.0
    %483 = vmatprep.subr.mxu0 0.0
    %484 = vmatpush1.msra.mxu0 0.0
    %485 = vmatprep.subr.mxu0 0.0
    %486 = vmatpush1.msra.mxu0 0.0
    %487 = vmatprep.subr.mxu0 0.0
    %488 = vmatpush1.msra.mxu0 0.0
    %489 = vmatprep.subr.mxu0 0.0
    %490 = vmatpush1.msra.mxu0 0.0
    %491 = vmatprep.subr.mxu0 0.0
    %492 = vmatpush1.msra.mxu0 0.0
    %493 = vmatprep.subr.mxu0 0.0
    %494 = vmatpush1.msra.mxu0 0.0
    %495 = vmatprep.subr.mxu0 0.0
    %496 = vmatpush1.msra.mxu0 0.0
    %497 = vmatprep.subr.mxu0 0.0
    %498 = vmatpush1.msra.mxu0 0.0
    %499 = vmatprep.subr.mxu0 0.0
    %500 = vmatpush1.msra.mxu0 0.0
    %501 = vmatprep.subr.mxu0 0.0
    %502 = vmatpush1.msra.mxu0 0.0
    %503 = vmatprep.subr.mxu0 0.0
    %504 = vmatpush1.msra.mxu0 0.0
    %505 = vmatprep.subr.mxu0 0.0
    %506 = vmatpush1.msra.mxu0 0.0
    %507 = vmatprep.subr.mxu0 0.0
    %508 = vmatpush1.msra.mxu0 0.0
    %509 = vmatprep.subr.mxu0 0.0
    %510 = vmatpush1.msra.mxu0 0.0
    %511 = vmatprep.subr.mxu0 0.0
    %512 = vmatpush1.msra.mxu0 0.0
    %513 = vmatprep.subr.mxu0 0.0
    %514 = vmatpush1.msra.mxu0 0.0
    %515 = vmatprep.subr.mxu0 0.0
    %516 = vmatpush1.msra.mxu0 0.0
    %517 = vmatprep.subr.mxu0 0.0
    %518 = vmatpush1.msra.mxu0 0.0
    %519 = vmatprep.subr.mxu0 0.0
    %520 = vmatpush1.msra.mxu0 0.0
    %521 = vmatprep.subr.mxu0 0.0
    %522 = vmatpush1.msra.mxu0 0.0
    %523 = vmatprep.subr.mxu0 0.0
    %524 = vmatpush1.msra.mxu0 0.0
    %525 = vmatprep.subr.mxu0 0.0
    %526 = vmatpush1.msra.mxu0 0.0
    %527 = vmatprep.mubr.f32.mxu0 0.0
    %528 = vmatmul.mubr.f32.gmra.mrb[0].mxu0 %v459
    %v529 = vpop.f32.mrb[0].mxu0
    %v530 = vadd.f32 0.0, %v529
    %v531 = vpop.f32.mrb[0].mxu0
    %v532 = vadd.f32 0.0, %v531
    %533 = vmatprep.mubr.f32.mxu0 0.0
    %534 = vmatmul.mubr.f32.gmra.mrb[0].mxu0 %v461
    %v535 = vpop.f32.mrb[0].mxu0
    %v536 = vadd.f32 0.0, %v535
    %v537 = vpop.f32.mrb[0].mxu0
    %v538 = vadd.f32 0.0, %v537
    %539 = vdwg.mxu0
    %v540 = vsel %vm251, %v530, %v532
    %v541 = vsel %vm252, %v536, %v538
    %v542 = vld [vmem:[%s222] sm:$0xff]
    %v543 = vld [vmem:[%s222 + $0x8] sm:$0xff]
    %v544 = vadd.f32 %v540, %v542
    %v545 = vadd.f32 %v541, %v543
    %v546 = vtanh.pop %v544
    %v547 = vtanh.pop %v545
    %v548 = vxor.u32 %v544, 2147483648
    %v549 = vxor.u32 %v545, 2147483648
    %v550 = vmul.f32 %v548, 1.442695
    %v551 = vpow.pop %v550
    %v552 = vmul.f32 %v549, 1.442695
    %v553 = vpow.pop %v552
    %v554 = vadd.f32 %v551, 1.0
    %v555 = vadd.f32 %v553, 1.0
    %v556 = vrcp.pop %v554
    %v557 = vmul.f32 1.0, %v556
    %v558 = vrcp.pop %v555
    %v559 = vmul.f32 1.0, %v558
    %v560 = vsel %vm257, %v546, %v557
    %v561 = vsel %vm257, %v547, %v559
    %v562 = vmul.f32 %v560, %v439
    %v563 = vmul.f32 %v561, %v440
    %566 = vrot.lane.b32.xlu0 %v560, 64
    %v567 = vpop.permute.xlu0 %566
    %568 = vrot.lane.b32.xlu0 %v561, 64
    %v569 = vpop.permute.xlu0 %568
    %v572 = vmul.f32 %v560, %v567
    %v573 = vmul.f32 %v561, %v569
    %576 = vrot.lane.b32.xlu0 %v572, 32
    %v577 = vpop.permute.xlu0 %576
    %578 = vrot.lane.b32.xlu0 %v573, 32
    %v579 = vpop.permute.xlu0 %578
    %v582 = vadd.f32 %v562, %v577
    %v583 = vadd.f32 %v563, %v579
    %v584 = vtanh.pop %v582
    %v585 = vtanh.pop %v583
    %588 = vrot.lane.b32.xlu0 %v584, 64
    %v589 = vpop.permute.xlu0 %588
    %590 = vrot.lane.b32.xlu0 %v585, 64
    %v591 = vpop.permute.xlu0 %590
    %v594 = vmul.f32 %v560, %v589
    %v595 = vmul.f32 %v561, %v591
    %598 = vrot.lane.b32.xlu0 %v594, 32
    %v599 = vpop.permute.xlu0 %598
    %600 = vrot.lane.b32.xlu0 %v595, 32
    %v601 = vpop.permute.xlu0 %600
    %v602 = vsel %vm79, %v599, 0
    %v604 = vsel %vm79, %v601, 0
    %606 = vmatprep.subr.mxu0 %v241
    %607 = vmatpush1.msra.mxu0 %v240
    %608 = vmatprep.subr.mxu0 %v243
    %609 = vmatpush1.msra.mxu0 %v242
    %610 = vmatprep.subr.mxu0 %v245
    %611 = vmatpush1.msra.mxu0 %v244
    %612 = vmatprep.subr.mxu0 %v247
    %613 = vmatpush1.msra.mxu0 %v246
    %614 = vmatprep.subr.mxu0 0.0
    %615 = vmatpush1.msra.mxu0 0.0
    %616 = vmatprep.subr.mxu0 0.0
    %617 = vmatpush1.msra.mxu0 0.0
    %618 = vmatprep.subr.mxu0 0.0
    %619 = vmatpush1.msra.mxu0 0.0
    %620 = vmatprep.subr.mxu0 0.0
    %621 = vmatpush1.msra.mxu0 0.0
    %622 = vmatprep.subr.mxu0 0.0
    %623 = vmatpush1.msra.mxu0 0.0
    %624 = vmatprep.subr.mxu0 0.0
    %625 = vmatpush1.msra.mxu0 0.0
    %626 = vmatprep.subr.mxu0 0.0
    %627 = vmatpush1.msra.mxu0 0.0
    %628 = vmatprep.subr.mxu0 0.0
    %629 = vmatpush1.msra.mxu0 0.0
    %630 = vmatprep.subr.mxu0 0.0
    %631 = vmatpush1.msra.mxu0 0.0
    %632 = vmatprep.subr.mxu0 0.0
    %633 = vmatpush1.msra.mxu0 0.0
    %634 = vmatprep.subr.mxu0 0.0
    %635 = vmatpush1.msra.mxu0 0.0
    %636 = vmatprep.subr.mxu0 0.0
    %637 = vmatpush1.msra.mxu0 0.0
    %638 = vmatprep.subr.mxu0 0.0
    %639 = vmatpush1.msra.mxu0 0.0
    %640 = vmatprep.subr.mxu0 0.0
    %641 = vmatpush1.msra.mxu0 0.0
    %642 = vmatprep.subr.mxu0 0.0
    %643 = vmatpush1.msra.mxu0 0.0
    %644 = vmatprep.subr.mxu0 0.0
    %645 = vmatpush1.msra.mxu0 0.0
    %646 = vmatprep.subr.mxu0 0.0
    %647 = vmatpush1.msra.mxu0 0.0
    %648 = vmatprep.subr.mxu0 0.0
    %649 = vmatpush1.msra.mxu0 0.0
    %650 = vmatprep.subr.mxu0 0.0
    %651 = vmatpush1.msra.mxu0 0.0
    %652 = vmatprep.subr.mxu0 0.0
    %653 = vmatpush1.msra.mxu0 0.0
    %654 = vmatprep.subr.mxu0 0.0
    %655 = vmatpush1.msra.mxu0 0.0
    %656 = vmatprep.subr.mxu0 0.0
    %657 = vmatpush1.msra.mxu0 0.0
    %658 = vmatprep.subr.mxu0 0.0
    %659 = vmatpush1.msra.mxu0 0.0
    %660 = vmatprep.subr.mxu0 0.0
    %661 = vmatpush1.msra.mxu0 0.0
    %662 = vmatprep.subr.mxu0 0.0
    %663 = vmatpush1.msra.mxu0 0.0
    %664 = vmatprep.subr.mxu0 0.0
    %665 = vmatpush1.msra.mxu0 0.0
    %666 = vmatprep.subr.mxu0 0.0
    %667 = vmatpush1.msra.mxu0 0.0
    %668 = vmatprep.subr.mxu0 0.0
    %669 = vmatpush1.msra.mxu0 0.0
    %670 = vmatprep.mubr.f32.mxu0 0.0
    %671 = vmatmul.mubr.f32.gmra.mrb[0].mxu0 %v602
    %v672 = vpop.f32.mrb[0].mxu0
    %v673 = vadd.f32 0.0, %v672
    %v674 = vpop.f32.mrb[0].mxu0
    %v675 = vadd.f32 0.0, %v674
    %676 = vmatprep.mubr.f32.mxu0 0.0
    %677 = vmatmul.mubr.f32.gmra.mrb[0].mxu0 %v604
    %v678 = vpop.f32.mrb[0].mxu0
    %v679 = vadd.f32 0.0, %v678
    %v680 = vpop.f32.mrb[0].mxu0
    %v681 = vadd.f32 0.0, %v680
    %682 = vdwg.mxu0
    %v683 = vsel %vm251, %v673, %v675
    %v684 = vsel %vm252, %v679, %v681
    %v685 = vld [vmem:[%s225] sm:$0xff]
    %v686 = vld [vmem:[%s225 + $0x8] sm:$0xff]
    %v687 = vadd.f32 %v683, %v685
    %v688 = vadd.f32 %v684, %v686
    %v689 = vtanh.pop %v687
    %v690 = vtanh.pop %v688
    %v691 = vxor.u32 %v687, 2147483648
    %v692 = vxor.u32 %v688, 2147483648
    %v693 = vmul.f32 %v691, 1.442695
    %v694 = vpow.pop %v693
    %v695 = vmul.f32 %v692, 1.442695
    %v696 = vpow.pop %v695
    %v697 = vadd.f32 %v694, 1.0
    %v698 = vadd.f32 %v696, 1.0
    %v699 = vrcp.pop %v697
    %v700 = vmul.f32 1.0, %v699
    %v701 = vrcp.pop %v698
    %v702 = vmul.f32 1.0, %v701
    %v703 = vsel %vm257, %v689, %v700
    %v704 = vsel %vm257, %v690, %v702
    %v705 = vmul.f32 %v703, %v582
    %v706 = vmul.f32 %v704, %v583
    %709 = vrot.lane.b32.xlu0 %v703, 64
    %v710 = vpop.permute.xlu0 %709
    %711 = vrot.lane.b32.xlu0 %v704, 64
    %v712 = vpop.permute.xlu0 %711
    %v715 = vmul.f32 %v703, %v710
    %v716 = vmul.f32 %v704, %v712
    %719 = vrot.lane.b32.xlu0 %v715, 32
    %v720 = vpop.permute.xlu0 %719
    %721 = vrot.lane.b32.xlu0 %v716, 32
    %v722 = vpop.permute.xlu0 %721
    %v725 = vadd.f32 %v705, %v720
    %v726 = vadd.f32 %v706, %v722
    %v727 = vtanh.pop %v725
    %v728 = vtanh.pop %v726
    %731 = vrot.lane.b32.xlu0 %v727, 64
    %v732 = vpop.permute.xlu0 %731
    %733 = vrot.lane.b32.xlu0 %v728, 64
    %v734 = vpop.permute.xlu0 %733
    %v737 = vmul.f32 %v703, %v732
    %v738 = vmul.f32 %v704, %v734
    %741 = vrot.lane.b32.xlu0 %v737, 32
    %v742 = vpop.permute.xlu0 %741
    %743 = vrot.lane.b32.xlu0 %v738, 32
    %v744 = vpop.permute.xlu0 %743
    %v745 = vsel %vm79, %v742, 0
    %v747 = vsel %vm79, %v744, 0
    %749 = vmatprep.subr.mxu0 %v241
    %750 = vmatpush1.msra.mxu0 %v240
    %751 = vmatprep.subr.mxu0 %v243
    %752 = vmatpush1.msra.mxu0 %v242
    %753 = vmatprep.subr.mxu0 %v245
    %754 = vmatpush1.msra.mxu0 %v244
    %755 = vmatprep.subr.mxu0 %v247
    %756 = vmatpush1.msra.mxu0 %v246
    %757 = vmatprep.subr.mxu0 0.0
    %758 = vmatpush1.msra.mxu0 0.0
    %759 = vmatprep.subr.mxu0 0.0
    %760 = vmatpush1.msra.mxu0 0.0
    %761 = vmatprep.subr.mxu0 0.0
    %762 = vmatpush1.msra.mxu0 0.0
    %763 = vmatprep.subr.mxu0 0.0
    %764 = vmatpush1.msra.mxu0 0.0
    %765 = vmatprep.subr.mxu0 0.0
    %766 = vmatpush1.msra.mxu0 0.0
    %767 = vmatprep.subr.mxu0 0.0
    %768 = vmatpush1.msra.mxu0 0.0
    %769 = vmatprep.subr.mxu0 0.0
    %770 = vmatpush1.msra.mxu0 0.0
    %771 = vmatprep.subr.mxu0 0.0
    %772 = vmatpush1.msra.mxu0 0.0
    %773 = vmatprep.subr.mxu0 0.0
    %774 = vmatpush1.msra.mxu0 0.0
    %775 = vmatprep.subr.mxu0 0.0
    %776 = vmatpush1.msra.mxu0 0.0
    %777 = vmatprep.subr.mxu0 0.0
    %778 = vmatpush1.msra.mxu0 0.0
    %779 = vmatprep.subr.mxu0 0.0
    %780 = vmatpush1.msra.mxu0 0.0
    %781 = vmatprep.subr.mxu0 0.0
    %782 = vmatpush1.msra.mxu0 0.0
    %783 = vmatprep.subr.mxu0 0.0
    %784 = vmatpush1.msra.mxu0 0.0
    %785 = vmatprep.subr.mxu0 0.0
    %786 = vmatpush1.msra.mxu0 0.0
    %787 = vmatprep.subr.mxu0 0.0
    %788 = vmatpush1.msra.mxu0 0.0
    %789 = vmatprep.subr.mxu0 0.0
    %790 = vmatpush1.msra.mxu0 0.0
    %791 = vmatprep.subr.mxu0 0.0
    %792 = vmatpush1.msra.mxu0 0.0
    %793 = vmatprep.subr.mxu0 0.0
    %794 = vmatpush1.msra.mxu0 0.0
    %795 = vmatprep.subr.mxu0 0.0
    %796 = vmatpush1.msra.mxu0 0.0
    %797 = vmatprep.subr.mxu0 0.0
    %798 = vmatpush1.msra.mxu0 0.0
    %799 = vmatprep.subr.mxu0 0.0
    %800 = vmatpush1.msra.mxu0 0.0
    %801 = vmatprep.subr.mxu0 0.0
    %802 = vmatpush1.msra.mxu0 0.0
    %803 = vmatprep.subr.mxu0 0.0
    %804 = vmatpush1.msra.mxu0 0.0
    %805 = vmatprep.subr.mxu0 0.0
    %806 = vmatpush1.msra.mxu0 0.0
    %807 = vmatprep.subr.mxu0 0.0
    %808 = vmatpush1.msra.mxu0 0.0
    %809 = vmatprep.subr.mxu0 0.0
    %810 = vmatpush1.msra.mxu0 0.0
    %811 = vmatprep.subr.mxu0 0.0
    %812 = vmatpush1.msra.mxu0 0.0
    %813 = vmatprep.mubr.f32.mxu0 0.0
    %814 = vmatmul.mubr.f32.gmra.mrb[0].mxu0 %v745
    %v815 = vpop.f32.mrb[0].mxu0
    %v816 = vadd.f32 0.0, %v815
    %v817 = vpop.f32.mrb[0].mxu0
    %v818 = vadd.f32 0.0, %v817
    %819 = vmatprep.mubr.f32.mxu0 0.0
    %820 = vmatmul.mubr.f32.gmra.mrb[0].mxu0 %v747
    %v821 = vpop.f32.mrb[0].mxu0
    %v822 = vadd.f32 0.0, %v821
    %v823 = vpop.f32.mrb[0].mxu0
    %v824 = vadd.f32 0.0, %v823
    %825 = vdwg.mxu0
    %v826 = vsel %vm251, %v816, %v818
    %v827 = vsel %vm252, %v822, %v824
    %v828 = vld [vmem:[%s228] sm:$0xff]
    %v829 = vld [vmem:[%s228 + $0x8] sm:$0xff]
    %v830 = vadd.f32 %v826, %v828
    %v831 = vadd.f32 %v827, %v829
    %v832 = vtanh.pop %v830
    %v833 = vtanh.pop %v831
    %v834 = vxor.u32 %v830, 2147483648
    %v835 = vxor.u32 %v831, 2147483648
    %v836 = vmul.f32 %v834, 1.442695
    %v837 = vpow.pop %v836
    %v838 = vmul.f32 %v835, 1.442695
    %v839 = vpow.pop %v838
    %v840 = vadd.f32 %v837, 1.0
    %v841 = vadd.f32 %v839, 1.0
    %v842 = vrcp.pop %v840
    %v843 = vmul.f32 1.0, %v842
    %v844 = vrcp.pop %v841
    %v845 = vmul.f32 1.0, %v844
    %v846 = vsel %vm257, %v832, %v843
    %v847 = vsel %vm257, %v833, %v845
    %v848 = vmul.f32 %v846, %v725
    %v849 = vmul.f32 %v847, %v726
    %852 = vrot.lane.b32.xlu0 %v846, 64
    %v853 = vpop.permute.xlu0 %852
    %854 = vrot.lane.b32.xlu0 %v847, 64
    %v855 = vpop.permute.xlu0 %854
    %v858 = vmul.f32 %v846, %v853
    %v859 = vmul.f32 %v847, %v855
    %862 = vrot.lane.b32.xlu0 %v858, 32
    %v863 = vpop.permute.xlu0 %862
    %864 = vrot.lane.b32.xlu0 %v859, 32
    %v865 = vpop.permute.xlu0 %864
    %v868 = vadd.f32 %v848, %v863
    %v869 = vadd.f32 %v849, %v865
    %v870 = vtanh.pop %v868
    %v871 = vtanh.pop %v869
    %874 = vrot.lane.b32.xlu0 %v870, 64
    %v875 = vpop.permute.xlu0 %874
    %876 = vrot.lane.b32.xlu0 %v871, 64
    %v877 = vpop.permute.xlu0 %876
    %v880 = vmul.f32 %v846, %v875
    %v881 = vmul.f32 %v847, %v877
    %884 = vrot.lane.b32.xlu0 %v880, 32
    %v885 = vpop.permute.xlu0 %884
    %886 = vrot.lane.b32.xlu0 %v881, 32
    %v887 = vpop.permute.xlu0 %886
    %v888 = vsel %vm79, %v885, 0
    %v890 = vsel %vm79, %v887, 0
    %892 = vmatprep.subr.mxu0 %v241
    %893 = vmatpush1.msra.mxu0 %v240
    %894 = vmatprep.subr.mxu0 %v243
    %895 = vmatpush1.msra.mxu0 %v242
    %896 = vmatprep.subr.mxu0 %v245
    %897 = vmatpush1.msra.mxu0 %v244
    %898 = vmatprep.subr.mxu0 %v247
    %899 = vmatpush1.msra.mxu0 %v246
    %900 = vmatprep.subr.mxu0 0.0
    %901 = vmatpush1.msra.mxu0 0.0
    %902 = vmatprep.subr.mxu0 0.0
    %903 = vmatpush1.msra.mxu0 0.0
    %904 = vmatprep.subr.mxu0 0.0
    %905 = vmatpush1.msra.mxu0 0.0
    %906 = vmatprep.subr.mxu0 0.0
    %907 = vmatpush1.msra.mxu0 0.0
    %908 = vmatprep.subr.mxu0 0.0
    %909 = vmatpush1.msra.mxu0 0.0
    %910 = vmatprep.subr.mxu0 0.0
    %911 = vmatpush1.msra.mxu0 0.0
    %912 = vmatprep.subr.mxu0 0.0
    %913 = vmatpush1.msra.mxu0 0.0
    %914 = vmatprep.subr.mxu0 0.0
    %915 = vmatpush1.msra.mxu0 0.0
    %916 = vmatprep.subr.mxu0 0.0
    %917 = vmatpush1.msra.mxu0 0.0
    %918 = vmatprep.subr.mxu0 0.0
    %919 = vmatpush1.msra.mxu0 0.0
    %920 = vmatprep.subr.mxu0 0.0
    %921 = vmatpush1.msra.mxu0 0.0
    %922 = vmatprep.subr.mxu0 0.0
    %923 = vmatpush1.msra.mxu0 0.0
    %924 = vmatprep.subr.mxu0 0.0
    %925 = vmatpush1.msra.mxu0 0.0
    %926 = vmatprep.subr.mxu0 0.0
    %927 = vmatpush1.msra.mxu0 0.0
    %928 = vmatprep.subr.mxu0 0.0
    %929 = vmatpush1.msra.mxu0 0.0
    %930 = vmatprep.subr.mxu0 0.0
    %931 = vmatpush1.msra.mxu0 0.0
    %932 = vmatprep.subr.mxu0 0.0
    %933 = vmatpush1.msra.mxu0 0.0
    %934 = vmatprep.subr.mxu0 0.0
    %935 = vmatpush1.msra.mxu0 0.0
    %936 = vmatprep.subr.mxu0 0.0
    %937 = vmatpush1.msra.mxu0 0.0
    %938 = vmatprep.subr.mxu0 0.0
    %939 = vmatpush1.msra.mxu0 0.0
    %940 = vmatprep.subr.mxu0 0.0
    %941 = vmatpush1.msra.mxu0 0.0
    %942 = vmatprep.subr.mxu0 0.0
    %943 = vmatpush1.msra.mxu0 0.0
    %944 = vmatprep.subr.mxu0 0.0
    %945 = vmatpush1.msra.mxu0 0.0
    %946 = vmatprep.subr.mxu0 0.0
    %947 = vmatpush1.msra.mxu0 0.0
    %948 = vmatprep.subr.mxu0 0.0
    %949 = vmatpush1.msra.mxu0 0.0
    %950 = vmatprep.subr.mxu0 0.0
    %951 = vmatpush1.msra.mxu0 0.0
    %952 = vmatprep.subr.mxu0 0.0
    %953 = vmatpush1.msra.mxu0 0.0
    %954 = vmatprep.subr.mxu0 0.0
    %955 = vmatpush1.msra.mxu0 0.0
    %956 = vmatprep.mubr.f32.mxu0 0.0
    %957 = vmatmul.mubr.f32.gmra.mrb[0].mxu0 %v888
    %v958 = vpop.f32.mrb[0].mxu0
    %v959 = vadd.f32 0.0, %v958
    %v960 = vpop.f32.mrb[0].mxu0
    %v961 = vadd.f32 0.0, %v960
    %962 = vmatprep.mubr.f32.mxu0 0.0
    %963 = vmatmul.mubr.f32.gmra.mrb[0].mxu0 %v890
    %v964 = vpop.f32.mrb[0].mxu0
    %v965 = vadd.f32 0.0, %v964
    %v966 = vpop.f32.mrb[0].mxu0
    %v967 = vadd.f32 0.0, %v966
    %968 = vdwg.mxu0
    %v969 = vsel %vm251, %v959, %v961
    %v970 = vsel %vm252, %v965, %v967
    %v971 = vld [vmem:[%s231] sm:$0xff]
    %v972 = vld [vmem:[%s231 + $0x8] sm:$0xff]
    %v973 = vadd.f32 %v969, %v971
    %v974 = vadd.f32 %v970, %v972
    %v975 = vtanh.pop %v973
    %v976 = vtanh.pop %v974
    %v977 = vxor.u32 %v973, 2147483648
    %v978 = vxor.u32 %v974, 2147483648
    %v979 = vmul.f32 %v977, 1.442695
    %v980 = vpow.pop %v979
    %v981 = vmul.f32 %v978, 1.442695
    %v982 = vpow.pop %v981
    %v983 = vadd.f32 %v980, 1.0
    %v984 = vadd.f32 %v982, 1.0
    %v985 = vrcp.pop %v983
    %v986 = vmul.f32 1.0, %v985
    %v987 = vrcp.pop %v984
    %v988 = vmul.f32 1.0, %v987
    %v989 = vsel %vm257, %v975, %v986
    %v990 = vsel %vm257, %v976, %v988
    %v991 = vmul.f32 %v989, %v868
    %v992 = vmul.f32 %v990, %v869
    %995 = vrot.lane.b32.xlu0 %v989, 64
    %v996 = vpop.permute.xlu0 %995
    %997 = vrot.lane.b32.xlu0 %v990, 64
    %v998 = vpop.permute.xlu0 %997
    %v1001 = vmul.f32 %v989, %v996
    %v1002 = vmul.f32 %v990, %v998
    %1005 = vrot.lane.b32.xlu0 %v1001, 32
    %v1006 = vpop.permute.xlu0 %1005
    %1007 = vrot.lane.b32.xlu0 %v1002, 32
    %v1008 = vpop.permute.xlu0 %1007
    %v1011 = vadd.f32 %v991, %v1006
    %v1012 = vadd.f32 %v992, %v1008
    %v1013 = vtanh.pop %v1011
    %v1014 = vtanh.pop %v1012
    %1017 = vrot.lane.b32.xlu0 %v1013, 64
    %v1018 = vpop.permute.xlu0 %1017
    %1019 = vrot.lane.b32.xlu0 %v1014, 64
    %v1020 = vpop.permute.xlu0 %1019
    %v1023 = vmul.f32 %v989, %v1018
    %v1024 = vmul.f32 %v990, %v1020
    %1027 = vrot.lane.b32.xlu0 %v1023, 32
    %v1028 = vpop.permute.xlu0 %1027
    %1029 = vrot.lane.b32.xlu0 %v1024, 32
    %v1030 = vpop.permute.xlu0 %1029
    %v1031 = vsel %vm79, %v1028, 0
    %v1033 = vsel %vm79, %v1030, 0
    %1035 = vmatprep.subr.mxu0 %v241
    %1036 = vmatpush1.msra.mxu0 %v240
    %1037 = vmatprep.subr.mxu0 %v243
    %1038 = vmatpush1.msra.mxu0 %v242
    %1039 = vmatprep.subr.mxu0 %v245
    %1040 = vmatpush1.msra.mxu0 %v244
    %1041 = vmatprep.subr.mxu0 %v247
    %1042 = vmatpush1.msra.mxu0 %v246
    %1043 = vmatprep.subr.mxu0 0.0
    %1044 = vmatpush1.msra.mxu0 0.0
    %1045 = vmatprep.subr.mxu0 0.0
    %1046 = vmatpush1.msra.mxu0 0.0
    %1047 = vmatprep.subr.mxu0 0.0
    %1048 = vmatpush1.msra.mxu0 0.0
    %1049 = vmatprep.subr.mxu0 0.0
    %1050 = vmatpush1.msra.mxu0 0.0
    %1051 = vmatprep.subr.mxu0 0.0
    %1052 = vmatpush1.msra.mxu0 0.0
    %1053 = vmatprep.subr.mxu0 0.0
    %1054 = vmatpush1.msra.mxu0 0.0
    %1055 = vmatprep.subr.mxu0 0.0
    %1056 = vmatpush1.msra.mxu0 0.0
    %1057 = vmatprep.subr.mxu0 0.0
    %1058 = vmatpush1.msra.mxu0 0.0
    %1059 = vmatprep.subr.mxu0 0.0
    %1060 = vmatpush1.msra.mxu0 0.0
    %1061 = vmatprep.subr.mxu0 0.0
    %1062 = vmatpush1.msra.mxu0 0.0
    %1063 = vmatprep.subr.mxu0 0.0
    %1064 = vmatpush1.msra.mxu0 0.0
    %1065 = vmatprep.subr.mxu0 0.0
    %1066 = vmatpush1.msra.mxu0 0.0
    %1067 = vmatprep.subr.mxu0 0.0
    %1068 = vmatpush1.msra.mxu0 0.0
    %1069 = vmatprep.subr.mxu0 0.0
    %1070 = vmatpush1.msra.mxu0 0.0
    %1071 = vmatprep.subr.mxu0 0.0
    %1072 = vmatpush1.msra.mxu0 0.0
    %1073 = vmatprep.subr.mxu0 0.0
    %1074 = vmatpush1.msra.mxu0 0.0
    %1075 = vmatprep.subr.mxu0 0.0
    %1076 = vmatpush1.msra.mxu0 0.0
    %1077 = vmatprep.subr.mxu0 0.0
    %1078 = vmatpush1.msra.mxu0 0.0
    %1079 = vmatprep.subr.mxu0 0.0
    %1080 = vmatpush1.msra.mxu0 0.0
    %1081 = vmatprep.subr.mxu0 0.0
    %1082 = vmatpush1.msra.mxu0 0.0
    %1083 = vmatprep.subr.mxu0 0.0
    %1084 = vmatpush1.msra.mxu0 0.0
    %1085 = vmatprep.subr.mxu0 0.0
    %1086 = vmatpush1.msra.mxu0 0.0
    %1087 = vmatprep.subr.mxu0 0.0
    %1088 = vmatpush1.msra.mxu0 0.0
    %1089 = vmatprep.subr.mxu0 0.0
    %1090 = vmatpush1.msra.mxu0 0.0
    %1091 = vmatprep.subr.mxu0 0.0
    %1092 = vmatpush1.msra.mxu0 0.0
    %1093 = vmatprep.subr.mxu0 0.0
    %1094 = vmatpush1.msra.mxu0 0.0
    %1095 = vmatprep.subr.mxu0 0.0
    %1096 = vmatpush1.msra.mxu0 0.0
    %1097 = vmatprep.subr.mxu0 0.0
    %1098 = vmatpush1.msra.mxu0 0.0
    %1099 = vmatprep.mubr.f32.mxu0 0.0
    %1100 = vmatmul.mubr.f32.gmra.mrb[0].mxu0 %v1031
    %v1101 = vpop.f32.mrb[0].mxu0
    %v1102 = vadd.f32 0.0, %v1101
    %v1103 = vpop.f32.mrb[0].mxu0
    %v1104 = vadd.f32 0.0, %v1103
    %1105 = vmatprep.mubr.f32.mxu0 0.0
    %1106 = vmatmul.mubr.f32.gmra.mrb[0].mxu0 %v1033
    %v1107 = vpop.f32.mrb[0].mxu0
    %v1108 = vadd.f32 0.0, %v1107
    %v1109 = vpop.f32.mrb[0].mxu0
    %v1110 = vadd.f32 0.0, %v1109
    %1111 = vdwg.mxu0
    %v1112 = vsel %vm251, %v1102, %v1104
    %v1113 = vsel %vm252, %v1108, %v1110
    %v1114 = vld [vmem:[%s234] sm:$0xff]
    %v1115 = vld [vmem:[%s234 + $0x8] sm:$0xff]
    %v1116 = vadd.f32 %v1112, %v1114
    %v1117 = vadd.f32 %v1113, %v1115
    %v1118 = vtanh.pop %v1116
    %v1119 = vtanh.pop %v1117
    %v1120 = vxor.u32 %v1116, 2147483648
    %v1121 = vxor.u32 %v1117, 2147483648
    %v1122 = vmul.f32 %v1120, 1.442695
    %v1123 = vpow.pop %v1122
    %v1124 = vmul.f32 %v1121, 1.442695
    %v1125 = vpow.pop %v1124
    %v1126 = vadd.f32 %v1123, 1.0
    %v1127 = vadd.f32 %v1125, 1.0
    %v1128 = vrcp.pop %v1126
    %v1129 = vmul.f32 1.0, %v1128
    %v1130 = vrcp.pop %v1127
    %v1131 = vmul.f32 1.0, %v1130
    %v1132 = vsel %vm257, %v1118, %v1129
    %v1133 = vsel %vm257, %v1119, %v1131
    %v1134 = vmul.f32 %v1132, %v1011
    %v1135 = vmul.f32 %v1133, %v1012
    %1138 = vrot.lane.b32.xlu0 %v1132, 64
    %v1139 = vpop.permute.xlu0 %1138
    %1140 = vrot.lane.b32.xlu0 %v1133, 64
    %v1141 = vpop.permute.xlu0 %1140
    %v1144 = vmul.f32 %v1132, %v1139
    %v1145 = vmul.f32 %v1133, %v1141
    %1148 = vrot.lane.b32.xlu0 %v1144, 32
    %v1149 = vpop.permute.xlu0 %1148
    %1150 = vrot.lane.b32.xlu0 %v1145, 32
    %v1151 = vpop.permute.xlu0 %1150
    %v1154 = vadd.f32 %v1134, %v1149
    %v1155 = vadd.f32 %v1135, %v1151
    %v1156 = vtanh.pop %v1154
    %v1157 = vtanh.pop %v1155
    %1160 = vrot.lane.b32.xlu0 %v1156, 64
    %v1161 = vpop.permute.xlu0 %1160
    %1162 = vrot.lane.b32.xlu0 %v1157, 64
    %v1163 = vpop.permute.xlu0 %1162
    %v1166 = vmul.f32 %v1132, %v1161
    %v1167 = vmul.f32 %v1133, %v1163
    %1170 = vrot.lane.b32.xlu0 %v1166, 32
    %v1171 = vpop.permute.xlu0 %1170
    %1172 = vrot.lane.b32.xlu0 %v1167, 32
    %v1173 = vpop.permute.xlu0 %1172
    %v1174 = vsel %vm79, %v1171, 0
    %v1176 = vsel %vm79, %v1173, 0
    %1178 = vmatprep.subr.mxu0 %v241
    %1179 = vmatpush1.msra.mxu0 %v240
    %1180 = vmatprep.subr.mxu0 %v243
    %1181 = vmatpush1.msra.mxu0 %v242
    %1182 = vmatprep.subr.mxu0 %v245
    %1183 = vmatpush1.msra.mxu0 %v244
    %1184 = vmatprep.subr.mxu0 %v247
    %1185 = vmatpush1.msra.mxu0 %v246
    %1186 = vmatprep.subr.mxu0 0.0
    %1187 = vmatpush1.msra.mxu0 0.0
    %1188 = vmatprep.subr.mxu0 0.0
    %1189 = vmatpush1.msra.mxu0 0.0
    %1190 = vmatprep.subr.mxu0 0.0
    %1191 = vmatpush1.msra.mxu0 0.0
    %1192 = vmatprep.subr.mxu0 0.0
    %1193 = vmatpush1.msra.mxu0 0.0
    %1194 = vmatprep.subr.mxu0 0.0
    %1195 = vmatpush1.msra.mxu0 0.0
    %1196 = vmatprep.subr.mxu0 0.0
    %1197 = vmatpush1.msra.mxu0 0.0
    %1198 = vmatprep.subr.mxu0 0.0
    %1199 = vmatpush1.msra.mxu0 0.0
    %1200 = vmatprep.subr.mxu0 0.0
    %1201 = vmatpush1.msra.mxu0 0.0
    %1202 = vmatprep.subr.mxu0 0.0
    %1203 = vmatpush1.msra.mxu0 0.0
    %1204 = vmatprep.subr.mxu0 0.0
    %1205 = vmatpush1.msra.mxu0 0.0
    %1206 = vmatprep.subr.mxu0 0.0
    %1207 = vmatpush1.msra.mxu0 0.0
    %1208 = vmatprep.subr.mxu0 0.0
    %1209 = vmatpush1.msra.mxu0 0.0
    %1210 = vmatprep.subr.mxu0 0.0
    %1211 = vmatpush1.msra.mxu0 0.0
    %1212 = vmatprep.subr.mxu0 0.0
    %1213 = vmatpush1.msra.mxu0 0.0
    %1214 = vmatprep.subr.mxu0 0.0
    %1215 = vmatpush1.msra.mxu0 0.0
    %1216 = vmatprep.subr.mxu0 0.0
    %1217 = vmatpush1.msra.mxu0 0.0
    %1218 = vmatprep.subr.mxu0 0.0
    %1219 = vmatpush1.msra.mxu0 0.0
    %1220 = vmatprep.subr.mxu0 0.0
    %1221 = vmatpush1.msra.mxu0 0.0
    %1222 = vmatprep.subr.mxu0 0.0
    %1223 = vmatpush1.msra.mxu0 0.0
    %1224 = vmatprep.subr.mxu0 0.0
    %1225 = vmatpush1.msra.mxu0 0.0
    %1226 = vmatprep.subr.mxu0 0.0
    %1227 = vmatpush1.msra.mxu0 0.0
    %1228 = vmatprep.subr.mxu0 0.0
    %1229 = vmatpush1.msra.mxu0 0.0
    %1230 = vmatprep.subr.mxu0 0.0
    %1231 = vmatpush1.msra.mxu0 0.0
    %1232 = vmatprep.subr.mxu0 0.0
    %1233 = vmatpush1.msra.mxu0 0.0
    %1234 = vmatprep.subr.mxu0 0.0
    %1235 = vmatpush1.msra.mxu0 0.0
    %1236 = vmatprep.subr.mxu0 0.0
    %1237 = vmatpush1.msra.mxu0 0.0
    %1238 = vmatprep.subr.mxu0 0.0
    %1239 = vmatpush1.msra.mxu0 0.0
    %1240 = vmatprep.subr.mxu0 0.0
    %1241 = vmatpush1.msra.mxu0 0.0
    %1242 = vmatprep.mubr.f32.mxu0 0.0
    %1243 = vmatmul.mubr.f32.gmra.mrb[0].mxu0 %v1174
    %v1244 = vpop.f32.mrb[0].mxu0
    %v1245 = vadd.f32 0.0, %v1244
    %v1246 = vpop.f32.mrb[0].mxu0
    %v1247 = vadd.f32 0.0, %v1246
    %1248 = vmatprep.mubr.f32.mxu0 0.0
    %1249 = vmatmul.mubr.f32.gmra.mrb[0].mxu0 %v1176
    %v1250 = vpop.f32.mrb[0].mxu0
    %v1251 = vpop.f32.mrb[0].mxu0
    %1252 = vdwg.mxu0
    %v1253 = vsel %vm251, %v1245, %v1247
    %v1254 = vld [vmem:[%s237] sm:$0xff]
    %v1255 = vadd.f32 %v1253, %v1254
    %v1256 = vtanh.pop %v1255
    %v1257 = vxor.u32 %v1255, 2147483648
    %v1258 = vmul.f32 %v1257, 1.442695
    %v1259 = vpow.pop %v1258
    %v1260 = vadd.f32 %v1259, 1.0
    %v1261 = vrcp.pop %v1260
    %v1262 = vmul.f32 1.0, %v1261
    %v1263 = vsel %vm257, %v1256, %v1262
    %v1264 = vmul.f32 %v1263, %v1154
    %1266 = vrot.lane.b32.xlu0 %v1263, 64
    %v1267 = vpop.permute.xlu0 %1266
    %v1269 = vmul.f32 %v1263, %v1267
    %1271 = vrot.lane.b32.xlu0 %v1269, 32
    %v1272 = vpop.permute.xlu0 %1271
    %v1274 = vadd.f32 %v1264, %v1272
    %v1275 = vtanh.pop %v1274
    %1277 = vrot.lane.b32.xlu0 %v1275, 64
    %v1278 = vpop.permute.xlu0 %1277
    %v1280 = vmul.f32 %v1263, %v1278
    %1282 = vrot.lane.b32.xlu0 %v1280, 32
    %v1283 = vpop.permute.xlu0 %1282
    %1285 = vrot.lane.b32.xlu0 %v309, 64
    %v1286 = vpop.permute.xlu0 %1285
    %v1288 = vsel %vm79, %v1283, %v1286
    %v1289 = vld [vmem:[%s4] sm:$0xff]
    %v1290 = vld [vmem:[%s4 + $0x8] sm:$0xff]
    %v1291 = vld [vmem:[%s4 + $0x10] sm:$0xff]
    %v1292 = vld [vmem:[%s4 + $0x18] sm:$0xff]
    %v1293 = vld [vmem:[%s4 + $0x20] sm:$0xff]
    %v1294 = vld [vmem:[%s4 + $0x28] sm:$0xff]
    %v1295 = vld [vmem:[%s4 + $0x30] sm:$0xff]
    %v1296 = vld [vmem:[%s4 + $0x38] sm:$0xff]
    %v1297 = vld [vmem:[%s5] sm:$0x1]
    %v1299 = vlaneseq
    %v1300 = vshrl.u32 %v1299, 7
    %v1301 = vsub.s32 0, %v1300
    %v1302 = vrot.slane %v1297, %v1301
    %vm1304 = vcmask 523264
    %v1306 = vsel %vm1304, %v1288, 0
    %1308 = vmatprep.subr.mxu0 0.0
    %1309 = vmatpush1.msra.mxu0 %v1289
    %1310 = vmatprep.subr.mxu0 0.0
    %1311 = vmatpush1.msra.mxu0 %v1290
    %1312 = vmatprep.subr.mxu0 0.0
    %1313 = vmatpush1.msra.mxu0 %v1291
    %1314 = vmatprep.subr.mxu0 0.0
    %1315 = vmatpush1.msra.mxu0 %v1292
    %1316 = vmatprep.subr.mxu0 0.0
    %1317 = vmatpush1.msra.mxu0 %v1293
    %1318 = vmatprep.subr.mxu0 0.0
    %1319 = vmatpush1.msra.mxu0 %v1294
    %1320 = vmatprep.subr.mxu0 0.0
    %1321 = vmatpush1.msra.mxu0 %v1295
    %1322 = vmatprep.subr.mxu0 0.0
    %1323 = vmatpush1.msra.mxu0 %v1296
    %1324 = vmatprep.subr.mxu0 0.0
    %1325 = vmatpush1.msra.mxu0 0.0
    %1326 = vmatprep.subr.mxu0 0.0
    %1327 = vmatpush1.msra.mxu0 0.0
    %1328 = vmatprep.subr.mxu0 0.0
    %1329 = vmatpush1.msra.mxu0 0.0
    %1330 = vmatprep.subr.mxu0 0.0
    %1331 = vmatpush1.msra.mxu0 0.0
    %1332 = vmatprep.subr.mxu0 0.0
    %1333 = vmatpush1.msra.mxu0 0.0
    %1334 = vmatprep.subr.mxu0 0.0
    %1335 = vmatpush1.msra.mxu0 0.0
    %1336 = vmatprep.subr.mxu0 0.0
    %1337 = vmatpush1.msra.mxu0 0.0
    %1338 = vmatprep.subr.mxu0 0.0
    %1339 = vmatpush1.msra.mxu0 0.0
    %1340 = vmatprep.subr.mxu0 0.0
    %1341 = vmatpush1.msra.mxu0 0.0
    %1342 = vmatprep.subr.mxu0 0.0
    %1343 = vmatpush1.msra.mxu0 0.0
    %1344 = vmatprep.subr.mxu0 0.0
    %1345 = vmatpush1.msra.mxu0 0.0
    %1346 = vmatprep.subr.mxu0 0.0
    %1347 = vmatpush1.msra.mxu0 0.0
    %1348 = vmatprep.subr.mxu0 0.0
    %1349 = vmatpush1.msra.mxu0 0.0
    %1350 = vmatprep.subr.mxu0 0.0
    %1351 = vmatpush1.msra.mxu0 0.0
    %1352 = vmatprep.subr.mxu0 0.0
    %1353 = vmatpush1.msra.mxu0 0.0
    %1354 = vmatprep.subr.mxu0 0.0
    %1355 = vmatpush1.msra.mxu0 0.0
    %1356 = vmatprep.subr.mxu0 0.0
    %1357 = vmatpush1.msra.mxu0 0.0
    %1358 = vmatprep.subr.mxu0 0.0
    %1359 = vmatpush1.msra.mxu0 0.0
    %1360 = vmatprep.subr.mxu0 0.0
    %1361 = vmatpush1.msra.mxu0 0.0
    %1362 = vmatprep.subr.mxu0 0.0
    %1363 = vmatpush1.msra.mxu0 0.0
    %1364 = vmatprep.subr.mxu0 0.0
    %1365 = vmatpush1.msra.mxu0 0.0
    %1366 = vmatprep.subr.mxu0 0.0
    %1367 = vmatpush1.msra.mxu0 0.0
    %1368 = vmatprep.subr.mxu0 0.0
    %1369 = vmatpush1.msra.mxu0 0.0
    %1370 = vmatprep.subr.mxu0 0.0
    %1371 = vmatpush1.msra.mxu0 0.0
    %1372 = vmatprep.mubr.f32.mxu0 0.0
    %1373 = vmatmul.mubr.f32.gmra.mrb[0].mxu0 %v1306
    %v1374 = vpop.f32.mrb[0].mxu0
    %v1375 = vadd.f32 %v1302, %v1374
    %v1376 = vpop.f32.mrb[0].mxu0
    %1377 = vdwg.mxu0
    %vm1378 = vcmask 15360
    %v1379 = vsel %vm1378, %v1375, -inf
    %1380 = vmax.xlane.f32.xlu0 %v1379
    %v1381 = vpop.xlane.xlu0 %1380
    %v1382 = vsub.f32 %v1375, %v1381
    %v1383 = vmul.f32 %v1382, 1.442695
    %v1384 = vpow.pop %v1383
    %v1385 = vsel %vm1378, %v1384, 0.0
    %1386 = vadd.xlane.f32.xlu0 %v1385
    %v1387 = vpop.xlane.xlu0 %1386
    %v1388 = vlog2.pop %v1387
    %v1389 = vmul.f32 %v1388, 0.6931472
    %v1390 = vadd.f32 %v1389, %v1381
    %v1391 = vsub.f32 %v1375, %v1390
    %1392 = vst.msk [vmem:[%s6] sm:$0xff] %vm1378, %v1391
    // Predicated region
    $region34: #{bilstm_sentiment_forward.1} parent=1 // pred_check
      _
    $region35: #{bilstm_sentiment_forward.1} parent=1 // pred_check_branch
      %1394 = sbr.rel (0) target = $region37
    $region36: #{bilstm_sentiment_forward.1} parent=1 // pred_region
      _
    $region37: #{bilstm_sentiment_forward.1} parent=1 // pred_fallthru
      _
    // Predicated region
    $region38: #{bilstm_sentiment_forward.1} parent=1 // pred_check
      _
    $region39: #{bilstm_sentiment_forward.1} parent=1 // pred_check_branch
      %1396 = sbr.rel (0) target = $region41
    $region40: #{bilstm_sentiment_forward.1} parent=1 // pred_region
      _
    $region41: #{bilstm_sentiment_forward.1} parent=1 // pred_fallthru
      _
    %1397 = vsyncpa [#allocation4], 1
    %1398 = vsyncpa [#allocation6], 1

</llo_original>
